<compile_context>
chip_gen: v6e
topology: v6e:2x2x1
jax: 0.10.0
libtpu: 0.0.40
codegen_flags: <defaults>
</compile_context>

<pallas_src>
import functools

import jax
import jax.numpy as jnp
from jax.experimental import pallas as pl
from jax.experimental.pallas import tpu as pltpu

# ----------------------------- config (small, synthetic "BERT") -------------
VOCAB_SIZE = 100
HIDDEN = 32
NUM_HEADS = 2
HEAD_DIM = HIDDEN // NUM_HEADS
NUM_LAYERS = 2
INTERMEDIATE = 64
MAX_POS = 16
TYPE_VOCAB = 2
NUM_LABELS = 5
CLS_PAD = 128          # lane-dense padded label dim (sliced back in the wrapper)
LN_EPS = 1e-12


# ----------------------------- in-kernel helpers -----------------------------
def _layernorm(x, g, b):
    mean = jnp.mean(x, axis=-1, keepdims=True)
    var = jnp.mean(jnp.square(x - mean), axis=-1, keepdims=True)
    inv = jax.lax.rsqrt(var + LN_EPS)
    return (x - mean) * inv * g + b


def _gelu(x):
    # TODO(synk): HF BERT default is exact erf-GELU; tanh approximation used here.
    return 0.5 * x * (1.0 + jnp.tanh(0.7978845608028654 * (x + 0.044715 * x * x * x)))


def _mm(a_f32, w_bf16_ref):
    """bf16 matmul with f32 accumulation on the MXU."""
    return jnp.dot(a_f32.astype(jnp.bfloat16), w_bf16_ref[...],
                   preferred_element_type=jnp.float32)


# ----------------------------- the single fused kernel -----------------------
def _bert_kernel(emb_ref, mask_ref, emb_g_ref, emb_b_ref,
                 qkv_w_ref, qkv_b_ref, o_w_ref, o_b_ref,
                 attn_g_ref, attn_b_ref,
                 i_w_ref, i_b_ref, out_w_ref, out_b_ref,
                 ffn_g_ref, ffn_b_ref,
                 pool_w_ref, pool_b_ref, cls_w_ref, cls_b_ref,
                 logits_ref,
                 x_ref,
                 *, batch, seq, num_heads, head_dim):
    """Grid axis = encoder layer.  x (activations) is carried in VMEM scratch."""
    layer = pl.program_id(0)
    H = num_heads * head_dim

    # ---- first grid step: embedding add + LayerNorm into the carried scratch
    @pl.when(layer == 0)
    def _():
        x_ref[...] = _layernorm(emb_ref[...], emb_g_ref[...], emb_b_ref[...])

    x = x_ref[...]                                                # [B*S, H] f32

    # ---- fused QKV projection (scale already folded into the Q columns) ----
    qkv = _mm(x, qkv_w_ref) + qkv_b_ref[...]                      # [B*S, 3H] f32
    qkv_bf = qkv.astype(jnp.bfloat16)                             # cast once

    mask_b = mask_ref[...][:, None, :]                            # [B, 1, S] additive

    # ---- attention: batched over the batch dim, unrolled over heads only ----
    ctx_parts = []
    for h in range(num_heads):
        q = qkv_bf[:, h * head_dim:(h + 1) * head_dim].reshape(batch, seq, head_dim)
        k = qkv_bf[:, H + h * head_dim:H + (h + 1) * head_dim].reshape(batch, seq, head_dim)
        v = qkv_bf[:, 2 * H + h * head_dim:2 * H + (h + 1) * head_dim].reshape(batch, seq, head_dim)
        s = jnp.einsum('bqd,bkd->bqk', q, k,
                       preferred_element_type=jnp.float32)        # [B, S, S]
        s = s + mask_b
        m = jnp.max(s, axis=-1, keepdims=True)
        p = jnp.exp(s - m)
        denom = jnp.sum(p, axis=-1, keepdims=True)
        p = p * pl.reciprocal(denom, approx=True)                 # EUP recip
        ctx_h = jnp.einsum('bqk,bkd->bqd', p.astype(jnp.bfloat16), v,
                           preferred_element_type=jnp.float32)    # [B, S, D]
        ctx_parts.append(ctx_h.reshape(batch * seq, head_dim))
    ctx_all = jnp.concatenate(ctx_parts, axis=-1)                 # [B*S, H] (lane concat)

    # ---- attention output projection + residual + LayerNorm -----------------
    attn_out = _mm(ctx_all, o_w_ref) + o_b_ref[...]
    x1 = _layernorm(attn_out + x, attn_g_ref[...], attn_b_ref[...])

    # ---- FFN (GELU) + residual + LayerNorm -----------------------------------
    inter = _gelu(_mm(x1, i_w_ref) + i_b_ref[...])                # [B*S, I]
    ffn_out = _mm(inter, out_w_ref) + out_b_ref[...]              # [B*S, H]
    out = _layernorm(ffn_out + x1, ffn_g_ref[...], ffn_b_ref[...])

    x_ref[...] = out                                              # carry to next layer

    # ---- last grid step: fused CLS slice + tanh pooler + classifier ---------
    @pl.when(layer == pl.num_programs(0) - 1)
    def _():
        cls_rows = x_ref[pl.ds(0, batch, stride=seq), :]          # [B, H] strided load
        pooled = jnp.tanh(_mm(cls_rows, pool_w_ref) + pool_b_ref[...])
        logits = _mm(pooled, cls_w_ref) + cls_b_ref[...]          # [B, CLS_PAD]
        logits_ref[...] = logits.astype(logits_ref.dtype)


def fused_bert(emb_sum, add_mask, params, *, batch, seq):
    """Whole BERT encoder stack + head in one pallas_call (grid over layers)."""
    kernel = functools.partial(
        _bert_kernel, batch=batch, seq=seq,
        num_heads=NUM_HEADS, head_dim=HEAD_DIM)

    const2 = lambda l: (0, 0)
    layer3 = lambda l: (l, 0, 0)

    # TODO(synk): at real BERT scale add a row-tiled grid over B*S (blocks a
    # multiple of 8 rows, hidden lane-dense) with dimension_semantics
    # ("parallel", "arbitrary") so v7x's second TensorCore is used and VMEM
    # residency stays under the 64 MiB physical ceiling.
    grid_spec = pltpu.PrefetchScalarGridSpec(
        num_scalar_prefetch=0,
        grid=(NUM_LAYERS,),
        in_specs=[
            pl.BlockSpec((batch * seq, HIDDEN), const2),            # emb_sum
            pl.BlockSpec((batch, seq), const2),                     # additive mask [B,S]
            pl.BlockSpec((1, HIDDEN), const2),                      # emb_ln_g
            pl.BlockSpec((1, HIDDEN), const2),                      # emb_ln_b
            pl.BlockSpec((None, HIDDEN, 3 * HIDDEN), layer3),       # qkv_w  [L,H,3H]
            pl.BlockSpec((None, 1, 3 * HIDDEN), layer3),            # qkv_b
            pl.BlockSpec((None, HIDDEN, HIDDEN), layer3),           # o_w
            pl.BlockSpec((None, 1, HIDDEN), layer3),                # o_b
            pl.BlockSpec((None, 1, HIDDEN), layer3),                # attn_ln_g
            pl.BlockSpec((None, 1, HIDDEN), layer3),                # attn_ln_b
            pl.BlockSpec((None, HIDDEN, INTERMEDIATE), layer3),     # i_w
            pl.BlockSpec((None, 1, INTERMEDIATE), layer3),          # i_b
            pl.BlockSpec((None, INTERMEDIATE, HIDDEN), layer3),     # out_w
            pl.BlockSpec((None, 1, HIDDEN), layer3),                # out_b
            pl.BlockSpec((None, 1, HIDDEN), layer3),                # ffn_ln_g
            pl.BlockSpec((None, 1, HIDDEN), layer3),                # ffn_ln_b
            pl.BlockSpec((HIDDEN, HIDDEN), const2),                 # pool_w
            pl.BlockSpec((1, HIDDEN), const2),                      # pool_b
            pl.BlockSpec((HIDDEN, CLS_PAD), const2),                # cls_w (padded)
            pl.BlockSpec((1, CLS_PAD), const2),                     # cls_b (padded)
        ],
        out_specs=pl.BlockSpec((batch, CLS_PAD), const2),
        scratch_shapes=[pltpu.VMEM((batch * seq, HIDDEN), jnp.float32)],
    )

    return pl.pallas_call(
        kernel,
        out_shape=jax.ShapeDtypeStruct((batch, CLS_PAD), jnp.float32),
        grid_spec=grid_spec,
        compiler_params=pltpu.CompilerParams(
            dimension_semantics=("arbitrary",),
            vmem_limit_bytes=64 * 1024 * 1024),
    )(emb_sum, add_mask,
      params["emb_ln_g"], params["emb_ln_b"],
      params["qkv_w"], params["qkv_b"],
      params["o_w"], params["o_b"],
      params["attn_ln_g"], params["attn_ln_b"],
      params["i_w"], params["i_b"],
      params["out_w"], params["out_b"],
      params["ffn_ln_g"], params["ffn_ln_b"],
      params["pool_w"], params["pool_b"],
      params["cls_w"], params["cls_b"])


# ----------------------------- parameter init --------------------------------
def init_params(key):
    keys = iter(jax.random.split(key, 64))

    def normal_f32(shape, scale=0.02):
        return scale * jax.random.normal(next(keys), shape, dtype=jnp.float32)

    L = NUM_LAYERS
    attn_scale = 1.0 / (HEAD_DIM ** 0.5)

    # Fused QKV weight [L, H, 3H]; 1/sqrt(head_dim) is folded into the Q block
    # (columns 0:H).  The Q bias would be scaled identically (it is zero here).
    qkv_w = normal_f32((L, HIDDEN, 3 * HIDDEN))
    qkv_w = qkv_w.at[:, :, :HIDDEN].multiply(attn_scale)

    # Classifier padded to a 128-lane-dense output slab (extra columns are zero).
    cls_w = jnp.zeros((HIDDEN, CLS_PAD), jnp.float32)
    cls_w = cls_w.at[:, :NUM_LABELS].set(normal_f32((HIDDEN, NUM_LABELS)))

    params = {
        "word_emb": normal_f32((VOCAB_SIZE, HIDDEN)),
        "pos_emb": normal_f32((MAX_POS, HIDDEN)),
        "type_emb": normal_f32((TYPE_VOCAB, HIDDEN)),
        "emb_ln_g": jnp.ones((1, HIDDEN), jnp.float32),
        "emb_ln_b": jnp.zeros((1, HIDDEN), jnp.float32),
        # stacked per-layer parameters (leading dim = NUM_LAYERS)
        "qkv_w": qkv_w.astype(jnp.bfloat16),
        "qkv_b": jnp.zeros((L, 1, 3 * HIDDEN), jnp.float32),
        "o_w": normal_f32((L, HIDDEN, HIDDEN)).astype(jnp.bfloat16),
        "o_b": jnp.zeros((L, 1, HIDDEN), jnp.float32),
        "attn_ln_g": jnp.ones((L, 1, HIDDEN), jnp.float32),
        "attn_ln_b": jnp.zeros((L, 1, HIDDEN), jnp.float32),
        "i_w": normal_f32((L, HIDDEN, INTERMEDIATE)).astype(jnp.bfloat16),
        "i_b": jnp.zeros((L, 1, INTERMEDIATE), jnp.float32),
        "out_w": normal_f32((L, INTERMEDIATE, HIDDEN)).astype(jnp.bfloat16),
        "out_b": jnp.zeros((L, 1, HIDDEN), jnp.float32),
        "ffn_ln_g": jnp.ones((L, 1, HIDDEN), jnp.float32),
        "ffn_ln_b": jnp.zeros((L, 1, HIDDEN), jnp.float32),
        # head
        "pool_w": normal_f32((HIDDEN, HIDDEN)).astype(jnp.bfloat16),
        "pool_b": jnp.zeros((1, HIDDEN), jnp.float32),
        "cls_w": cls_w.astype(jnp.bfloat16),
        "cls_b": jnp.zeros((1, CLS_PAD), jnp.float32),
    }
    return params


# ----------------------------- forward (BERT + linear head) ------------------
def bert_multilabel_forward(params, input_ids, att_mask=None):
    B, S = input_ids.shape
    if att_mask is None:
        att_mask = jnp.ones((B, S), jnp.int32)

    # --- embeddings: gather (no one-hot matmul) + position + token-type ------
    word = jnp.take(params["word_emb"], input_ids.reshape(-1), axis=0)   # [B*S, H]
    # TODO(synk): token_type_ids hardcoded to 0, as in the original synthetic setup.
    pos_type = params["pos_emb"][:S][None, :, :] + params["type_emb"][0][None, None, :]
    emb_sum = word + jnp.broadcast_to(pos_type, (B, S, HIDDEN)).reshape(B * S, HIDDEN)

    # --- additive attention mask stays tiny: [B, S]; broadcast happens in-kernel
    add_mask = (1.0 - att_mask.astype(jnp.float32)) * -10000.0           # [B, S]

    # --- everything else is ONE fused pallas_call (embed LN -> layers -> head)
    logits_pad = fused_bert(emb_sum, add_mask, params, batch=B, seq=S)   # [B, 128]
    return logits_pad[:, :NUM_LABELS]


# ----------------------------- main ------------------------------------------
if __name__ == "__main__":
    key = jax.random.PRNGKey(0)
    pkey, ikey = jax.random.split(key)

    params = init_params(pkey)

    B, S = 2, 8
    input_ids = jax.random.randint(ikey, (B, S), 0, VOCAB_SIZE, dtype=jnp.int32)
    att_mask = jnp.array([[1, 1, 1, 1, 1, 1, 1, 1],
                          [1, 1, 1, 1, 1, 0, 0, 0]], dtype=jnp.int32)

    logits = jax.jit(bert_multilabel_forward)(params, input_ids, att_mask)
    logits = jax.block_until_ready(logits)

    assert logits.shape == (B, NUM_LABELS)
    assert bool(jnp.all(jnp.isfinite(logits)))
    print("KERNEL_OK")
</pallas_src>

<mosaic_0001>
module attributes {stable_mosaic.version = 11 : i64} {
  func.func @_bert_kernel(%arg0: i32, %arg1: memref<16x32xf32, #tpu.memory_space<vmem>>, %arg2: memref<2x8xf32, #tpu.memory_space<vmem>>, %arg3: memref<1x32xf32, #tpu.memory_space<vmem>>, %arg4: memref<1x32xf32, #tpu.memory_space<vmem>>, %arg5: memref<1x32x96xbf16, #tpu.memory_space<vmem>>, %arg6: memref<1x1x96xf32, #tpu.memory_space<vmem>>, %arg7: memref<1x32x32xbf16, #tpu.memory_space<vmem>>, %arg8: memref<1x1x32xf32, #tpu.memory_space<vmem>>, %arg9: memref<1x1x32xf32, #tpu.memory_space<vmem>>, %arg10: memref<1x1x32xf32, #tpu.memory_space<vmem>>, %arg11: memref<1x32x64xbf16, #tpu.memory_space<vmem>>, %arg12: memref<1x1x64xf32, #tpu.memory_space<vmem>>, %arg13: memref<1x64x32xbf16, #tpu.memory_space<vmem>>, %arg14: memref<1x1x32xf32, #tpu.memory_space<vmem>>, %arg15: memref<1x1x32xf32, #tpu.memory_space<vmem>>, %arg16: memref<1x1x32xf32, #tpu.memory_space<vmem>>, %arg17: memref<32x32xbf16, #tpu.memory_space<vmem>>, %arg18: memref<1x32xf32, #tpu.memory_space<vmem>>, %arg19: memref<32x128xbf16, #tpu.memory_space<vmem>>, %arg20: memref<1x128xf32, #tpu.memory_space<vmem>>, %arg21: memref<2x128xf32, #tpu.memory_space<vmem>>, %arg22: memref<16x32xf32, #tpu.memory_space<vmem>>) attributes {dimension_semantics = [#tpu.dimension_semantics<arbitrary>], iteration_bounds = array<i64: 2>, scalar_prefetch = 0 : i64, scratch_operands = 1 : i64, tpu.core_type = #tpu.core_type<tc>, window_params = [{pipeline_mode = #tpu.pipeline_mode<synchronous>, transform_indices = @transform_0, window_bounds = array<i64: 16, 32>}, {pipeline_mode = #tpu.pipeline_mode<synchronous>, transform_indices = @transform_1, window_bounds = array<i64: 2, 8>}, {pipeline_mode = #tpu.pipeline_mode<synchronous>, transform_indices = @transform_2, window_bounds = array<i64: 1, 32>}, {pipeline_mode = #tpu.pipeline_mode<synchronous>, transform_indices = @transform_3, window_bounds = array<i64: 1, 32>}, {transform_indices = @transform_4, window_bounds = array<i64: 1, 32, 96>}, {transform_indices = @transform_5, window_bounds = array<i64: 1, 1, 96>}, {transform_indices = @transform_6, window_bounds = array<i64: 1, 32, 32>}, {transform_indices = @transform_7, window_bounds = array<i64: 1, 1, 32>}, {transform_indices = @transform_8, window_bounds = array<i64: 1, 1, 32>}, {transform_indices = @transform_9, window_bounds = array<i64: 1, 1, 32>}, {transform_indices = @transform_10, window_bounds = array<i64: 1, 32, 64>}, {transform_indices = @transform_11, window_bounds = array<i64: 1, 1, 64>}, {transform_indices = @transform_12, window_bounds = array<i64: 1, 64, 32>}, {transform_indices = @transform_13, window_bounds = array<i64: 1, 1, 32>}, {transform_indices = @transform_14, window_bounds = array<i64: 1, 1, 32>}, {transform_indices = @transform_15, window_bounds = array<i64: 1, 1, 32>}, {pipeline_mode = #tpu.pipeline_mode<synchronous>, transform_indices = @transform_16, window_bounds = array<i64: 32, 32>}, {pipeline_mode = #tpu.pipeline_mode<synchronous>, transform_indices = @transform_17, window_bounds = array<i64: 1, 32>}, {pipeline_mode = #tpu.pipeline_mode<synchronous>, transform_indices = @transform_18, window_bounds = array<i64: 32, 128>}, {pipeline_mode = #tpu.pipeline_mode<synchronous>, transform_indices = @transform_19, window_bounds = array<i64: 1, 128>}, {pipeline_mode = #tpu.pipeline_mode<synchronous>, transform_indices = @transform_20, window_bounds = array<i64: 2, 128>}]} {
    %c0_i32 = arith.constant 0 : i32
    %0 = arith.cmpi eq, %arg0, %c0_i32 : i32
    %1 = arith.extui %0 : i1 to i32
    %c0_i32_0 = arith.constant 0 : i32
    %2 = arith.cmpi ne, %1, %c0_i32_0 : i32
    scf.if %2 {
      %c0_68 = arith.constant 0 : index
      %c0_69 = arith.constant 0 : index
      %155 = vector.load %arg1[%c0_68, %c0_69] : memref<16x32xf32, #tpu.memory_space<vmem>>, vector<16x32xf32>
      %c0_70 = arith.constant 0 : index
      %c0_71 = arith.constant 0 : index
      %156 = vector.load %arg3[%c0_70, %c0_71] : memref<1x32xf32, #tpu.memory_space<vmem>>, vector<1x32xf32>
      %c0_72 = arith.constant 0 : index
      %c0_73 = arith.constant 0 : index
      %157 = vector.load %arg4[%c0_72, %c0_73] : memref<1x32xf32, #tpu.memory_space<vmem>>, vector<1x32xf32>
      %cst_74 = arith.constant dense<0.000000e+00> : vector<16xf32>
      %158 = vector.multi_reduction <add>, %155, %cst_74 [1] : vector<16x32xf32> to vector<16xf32>
      %159 = vector.shape_cast %158 : vector<16xf32> to vector<16x1xf32>
      %cst_75 = arith.constant 3.200000e+01 : f32
      %160 = vector.broadcast %cst_75 : f32 to vector<16x1xf32>
      %161 = arith.divf %159, %160 : vector<16x1xf32>
      %162 = vector.broadcast %161 : vector<16x1xf32> to vector<16x32xf32>
      %163 = arith.subf %155, %162 : vector<16x32xf32>
      %164 = arith.mulf %163, %163 : vector<16x32xf32>
      %cst_76 = arith.constant dense<0.000000e+00> : vector<16xf32>
      %165 = vector.multi_reduction <add>, %164, %cst_76 [1] : vector<16x32xf32> to vector<16xf32>
      %166 = vector.shape_cast %165 : vector<16xf32> to vector<16x1xf32>
      %cst_77 = arith.constant 3.200000e+01 : f32
      %167 = vector.broadcast %cst_77 : f32 to vector<16x1xf32>
      %168 = arith.divf %166, %167 : vector<16x1xf32>
      %cst_78 = arith.constant 9.99999996E-13 : f32
      %169 = vector.broadcast %cst_78 : f32 to vector<16x1xf32>
      %170 = arith.addf %168, %169 : vector<16x1xf32>
      %171 = math.rsqrt %170 : vector<16x1xf32>
      %172 = vector.broadcast %161 : vector<16x1xf32> to vector<16x32xf32>
      %173 = arith.subf %155, %172 : vector<16x32xf32>
      %174 = vector.broadcast %171 : vector<16x1xf32> to vector<16x32xf32>
      %175 = arith.mulf %173, %174 : vector<16x32xf32>
      %176 = vector.broadcast %156 : vector<1x32xf32> to vector<16x32xf32>
      %177 = arith.mulf %175, %176 : vector<16x32xf32>
      %178 = vector.broadcast %157 : vector<1x32xf32> to vector<16x32xf32>
      %179 = arith.addf %177, %178 : vector<16x32xf32>
      %c0_79 = arith.constant 0 : index
      %c0_80 = arith.constant 0 : index
      %180 = vector.load %arg22[%c0_79, %c0_80] : memref<16x32xf32, #tpu.memory_space<vmem>>, vector<16x32xf32>
      tpu.vector_store %arg22[%c0_79, %c0_80], %179 {strides = array<i32>} : memref<16x32xf32, #tpu.memory_space<vmem>>, vector<16x32xf32>,
    } else {
    }
    %c0 = arith.constant 0 : index
    %c0_1 = arith.constant 0 : index
    %3 = vector.load %arg22[%c0, %c0_1] : memref<16x32xf32, #tpu.memory_space<vmem>>, vector<16x32xf32>
    %4 = arith.truncf %3 : vector<16x32xf32> to vector<16x32xbf16>
    %c0_2 = arith.constant 0 : index
    %c0_3 = arith.constant 0 : index
    %c0_4 = arith.constant 0 : index
    %5 = vector.load %arg5[%c0_2, %c0_3, %c0_4] : memref<1x32x96xbf16, #tpu.memory_space<vmem>>, vector<1x32x96xbf16>
    %6 = vector.shape_cast %5 : vector<1x32x96xbf16> to vector<32x96xbf16>
    %cst = arith.constant dense<0.000000e+00> : vector<16x96xf32>
    %7 = tpu.matmul %4, %6, %cst {dimension_numbers = #tpu.dot_dimension_numbers<[1], [0], [0], [1], [0, 0, 1, 1], [], []>} : vector<16x32xbf16>, vector<32x96xbf16>, vector<16x96xf32> -> vector<16x96xf32>
    %c0_5 = arith.constant 0 : index
    %c0_6 = arith.constant 0 : index
    %c0_7 = arith.constant 0 : index
    %8 = vector.load %arg6[%c0_5, %c0_6, %c0_7] : memref<1x1x96xf32, #tpu.memory_space<vmem>>, vector<1x1x96xf32>
    %9 = vector.shape_cast %8 : vector<1x1x96xf32> to vector<1x96xf32>
    %10 = vector.broadcast %9 : vector<1x96xf32> to vector<16x96xf32>
    %11 = arith.addf %7, %10 : vector<16x96xf32>
    %12 = arith.truncf %11 : vector<16x96xf32> to vector<16x96xbf16>
    %c0_8 = arith.constant 0 : index
    %c0_9 = arith.constant 0 : index
    %13 = vector.load %arg2[%c0_8, %c0_9] : memref<2x8xf32, #tpu.memory_space<vmem>>, vector<2x8xf32>
    %14 = vector.shape_cast %13 : vector<2x8xf32> to vector<2x1x8xf32>
    %15 = vector.extract_strided_slice %12 {offsets = [0, 0], sizes = [16, 16], strides = [1, 1]} : vector<16x96xbf16> to vector<16x16xbf16>
    %16 = vector.shape_cast %15 : vector<16x16xbf16> to vector<2x8x16xbf16>
    %17 = vector.extract_strided_slice %12 {offsets = [0, 32], sizes = [16, 16], strides = [1, 1]} : vector<16x96xbf16> to vector<16x16xbf16>
    %18 = vector.shape_cast %17 : vector<16x16xbf16> to vector<2x8x16xbf16>
    %19 = vector.extract_strided_slice %12 {offsets = [0, 64], sizes = [16, 16], strides = [1, 1]} : vector<16x96xbf16> to vector<16x16xbf16>
    %20 = vector.shape_cast %19 : vector<16x16xbf16> to vector<2x8x16xbf16>
    "tpu.trace_start"() <{level = 10 : i32, message = "bqd,bkd->bqk"}> : () -> ()
    %cst_10 = arith.constant dense<0.000000e+00> : vector<2x8x8xf32>
    %21 = tpu.matmul %16, %18, %cst_10 {dimension_numbers = #tpu.dot_dimension_numbers<[2], [2], [1], [1], [0, 0, 0, 1, 1, 1], [0], [0]>} : vector<2x8x16xbf16>, vector<2x8x16xbf16>, vector<2x8x8xf32> -> vector<2x8x8xf32>
    "tpu.trace_stop"() : () -> ()
    %22 = vector.broadcast %14 : vector<2x1x8xf32> to vector<2x8x8xf32>
    %23 = arith.addf %21, %22 : vector<2x8x8xf32>
    %cst_11 = arith.constant dense<0xFF800000> : vector<2x8xf32>
    %24 = vector.multi_reduction <maximumf>, %23, %cst_11 [2] : vector<2x8x8xf32> to vector<2x8xf32>
    %25 = vector.shape_cast %24 : vector<2x8xf32> to vector<2x8x1xf32>
    %26 = vector.broadcast %25 : vector<2x8x1xf32> to vector<2x8x8xf32>
    %27 = arith.subf %23, %26 : vector<2x8x8xf32>
    %28 = math.exp %27 : vector<2x8x8xf32>
    %cst_12 = arith.constant dense<0.000000e+00> : vector<2x8xf32>
    %29 = vector.multi_reduction <add>, %28, %cst_12 [2] : vector<2x8x8xf32> to vector<2x8xf32>
    %30 = vector.shape_cast %29 : vector<2x8xf32> to vector<2x8x1xf32>
    %31 = tpu.reciprocal %30 {approx = true} : vector<2x8x1xf32> -> vector<2x8x1xf32>
    %32 = vector.broadcast %31 : vector<2x8x1xf32> to vector<2x8x8xf32>
    %33 = arith.mulf %28, %32 : vector<2x8x8xf32>
    %34 = arith.truncf %33 : vector<2x8x8xf32> to vector<2x8x8xbf16>
    "tpu.trace_start"() <{level = 10 : i32, message = "bqk,bkd->bqd"}> : () -> ()
    %cst_13 = arith.constant dense<0.000000e+00> : vector<2x8x16xf32>
    %35 = tpu.matmul %34, %20, %cst_13 {dimension_numbers = #tpu.dot_dimension_numbers<[2], [1], [1], [2], [0, 0, 0, 1, 1, 2], [0], [0]>} : vector<2x8x8xbf16>, vector<2x8x16xbf16>, vector<2x8x16xf32> -> vector<2x8x16xf32>
    "tpu.trace_stop"() : () -> ()
    %36 = vector.shape_cast %35 : vector<2x8x16xf32> to vector<16x16xf32>
    %37 = vector.extract_strided_slice %12 {offsets = [0, 16], sizes = [16, 16], strides = [1, 1]} : vector<16x96xbf16> to vector<16x16xbf16>
    %38 = vector.shape_cast %37 : vector<16x16xbf16> to vector<2x8x16xbf16>
    %39 = vector.extract_strided_slice %12 {offsets = [0, 48], sizes = [16, 16], strides = [1, 1]} : vector<16x96xbf16> to vector<16x16xbf16>
    %40 = vector.shape_cast %39 : vector<16x16xbf16> to vector<2x8x16xbf16>
    %41 = vector.extract_strided_slice %12 {offsets = [0, 80], sizes = [16, 16], strides = [1, 1]} : vector<16x96xbf16> to vector<16x16xbf16>
    %42 = vector.shape_cast %41 : vector<16x16xbf16> to vector<2x8x16xbf16>
    "tpu.trace_start"() <{level = 10 : i32, message = "bqd,bkd->bqk"}> : () -> ()
    %cst_14 = arith.constant dense<0.000000e+00> : vector<2x8x8xf32>
    %43 = tpu.matmul %38, %40, %cst_14 {dimension_numbers = #tpu.dot_dimension_numbers<[2], [2], [1], [1], [0, 0, 0, 1, 1, 1], [0], [0]>} : vector<2x8x16xbf16>, vector<2x8x16xbf16>, vector<2x8x8xf32> -> vector<2x8x8xf32>
    "tpu.trace_stop"() : () -> ()
    %44 = vector.broadcast %14 : vector<2x1x8xf32> to vector<2x8x8xf32>
    %45 = arith.addf %43, %44 : vector<2x8x8xf32>
    %cst_15 = arith.constant dense<0xFF800000> : vector<2x8xf32>
    %46 = vector.multi_reduction <maximumf>, %45, %cst_15 [2] : vector<2x8x8xf32> to vector<2x8xf32>
    %47 = vector.shape_cast %46 : vector<2x8xf32> to vector<2x8x1xf32>
    %48 = vector.broadcast %47 : vector<2x8x1xf32> to vector<2x8x8xf32>
    %49 = arith.subf %45, %48 : vector<2x8x8xf32>
    %50 = math.exp %49 : vector<2x8x8xf32>
    %cst_16 = arith.constant dense<0.000000e+00> : vector<2x8xf32>
    %51 = vector.multi_reduction <add>, %50, %cst_16 [2] : vector<2x8x8xf32> to vector<2x8xf32>
    %52 = vector.shape_cast %51 : vector<2x8xf32> to vector<2x8x1xf32>
    %53 = tpu.reciprocal %52 {approx = true} : vector<2x8x1xf32> -> vector<2x8x1xf32>
    %54 = vector.broadcast %53 : vector<2x8x1xf32> to vector<2x8x8xf32>
    %55 = arith.mulf %50, %54 : vector<2x8x8xf32>
    %56 = arith.truncf %55 : vector<2x8x8xf32> to vector<2x8x8xbf16>
    "tpu.trace_start"() <{level = 10 : i32, message = "bqk,bkd->bqd"}> : () -> ()
    %cst_17 = arith.constant dense<0.000000e+00> : vector<2x8x16xf32>
    %57 = tpu.matmul %56, %42, %cst_17 {dimension_numbers = #tpu.dot_dimension_numbers<[2], [1], [1], [2], [0, 0, 0, 1, 1, 2], [0], [0]>} : vector<2x8x8xbf16>, vector<2x8x16xbf16>, vector<2x8x16xf32> -> vector<2x8x16xf32>
    "tpu.trace_stop"() : () -> ()
    %58 = vector.shape_cast %57 : vector<2x8x16xf32> to vector<16x16xf32>
    %59 = tpu.concatenate %36, %58 in 1 : vector<16x16xf32>, vector<16x16xf32> -> vector<16x32xf32>
    %60 = arith.truncf %59 : vector<16x32xf32> to vector<16x32xbf16>
    %c0_18 = arith.constant 0 : index
    %c0_19 = arith.constant 0 : index
    %c0_20 = arith.constant 0 : index
    %61 = vector.load %arg7[%c0_18, %c0_19, %c0_20] : memref<1x32x32xbf16, #tpu.memory_space<vmem>>, vector<1x32x32xbf16>
    %62 = vector.shape_cast %61 : vector<1x32x32xbf16> to vector<32x32xbf16>
    %cst_21 = arith.constant dense<0.000000e+00> : vector<16x32xf32>
    %63 = tpu.matmul %60, %62, %cst_21 {dimension_numbers = #tpu.dot_dimension_numbers<[1], [0], [0], [1], [0, 0, 1, 1], [], []>} : vector<16x32xbf16>, vector<32x32xbf16>, vector<16x32xf32> -> vector<16x32xf32>
    %c0_22 = arith.constant 0 : index
    %c0_23 = arith.constant 0 : index
    %c0_24 = arith.constant 0 : index
    %64 = vector.load %arg8[%c0_22, %c0_23, %c0_24] : memref<1x1x32xf32, #tpu.memory_space<vmem>>, vector<1x1x32xf32>
    %65 = vector.shape_cast %64 : vector<1x1x32xf32> to vector<1x32xf32>
    %66 = vector.broadcast %65 : vector<1x32xf32> to vector<16x32xf32>
    %67 = arith.addf %63, %66 : vector<16x32xf32>
    %68 = arith.addf %67, %3 : vector<16x32xf32>
    %c0_25 = arith.constant 0 : index
    %c0_26 = arith.constant 0 : index
    %c0_27 = arith.constant 0 : index
    %69 = vector.load %arg9[%c0_25, %c0_26, %c0_27] : memref<1x1x32xf32, #tpu.memory_space<vmem>>, vector<1x1x32xf32>
    %70 = vector.shape_cast %69 : vector<1x1x32xf32> to vector<1x32xf32>
    %c0_28 = arith.constant 0 : index
    %c0_29 = arith.constant 0 : index
    %c0_30 = arith.constant 0 : index
    %71 = vector.load %arg10[%c0_28, %c0_29, %c0_30] : memref<1x1x32xf32, #tpu.memory_space<vmem>>, vector<1x1x32xf32>
    %72 = vector.shape_cast %71 : vector<1x1x32xf32> to vector<1x32xf32>
    %cst_31 = arith.constant dense<0.000000e+00> : vector<16xf32>
    %73 = vector.multi_reduction <add>, %68, %cst_31 [1] : vector<16x32xf32> to vector<16xf32>
    %74 = vector.shape_cast %73 : vector<16xf32> to vector<16x1xf32>
    %cst_32 = arith.constant 3.200000e+01 : f32
    %75 = vector.broadcast %cst_32 : f32 to vector<16x1xf32>
    %76 = arith.divf %74, %75 : vector<16x1xf32>
    %77 = vector.broadcast %76 : vector<16x1xf32> to vector<16x32xf32>
    %78 = arith.subf %68, %77 : vector<16x32xf32>
    %79 = arith.mulf %78, %78 : vector<16x32xf32>
    %cst_33 = arith.constant dense<0.000000e+00> : vector<16xf32>
    %80 = vector.multi_reduction <add>, %79, %cst_33 [1] : vector<16x32xf32> to vector<16xf32>
    %81 = vector.shape_cast %80 : vector<16xf32> to vector<16x1xf32>
    %cst_34 = arith.constant 3.200000e+01 : f32
    %82 = vector.broadcast %cst_34 : f32 to vector<16x1xf32>
    %83 = arith.divf %81, %82 : vector<16x1xf32>
    %cst_35 = arith.constant 9.99999996E-13 : f32
    %84 = vector.broadcast %cst_35 : f32 to vector<16x1xf32>
    %85 = arith.addf %83, %84 : vector<16x1xf32>
    %86 = math.rsqrt %85 : vector<16x1xf32>
    %87 = vector.broadcast %76 : vector<16x1xf32> to vector<16x32xf32>
    %88 = arith.subf %68, %87 : vector<16x32xf32>
    %89 = vector.broadcast %86 : vector<16x1xf32> to vector<16x32xf32>
    %90 = arith.mulf %88, %89 : vector<16x32xf32>
    %91 = vector.broadcast %70 : vector<1x32xf32> to vector<16x32xf32>
    %92 = arith.mulf %90, %91 : vector<16x32xf32>
    %93 = vector.broadcast %72 : vector<1x32xf32> to vector<16x32xf32>
    %94 = arith.addf %92, %93 : vector<16x32xf32>
    %95 = arith.truncf %94 : vector<16x32xf32> to vector<16x32xbf16>
    %c0_36 = arith.constant 0 : index
    %c0_37 = arith.constant 0 : index
    %c0_38 = arith.constant 0 : index
    %96 = vector.load %arg11[%c0_36, %c0_37, %c0_38] : memref<1x32x64xbf16, #tpu.memory_space<vmem>>, vector<1x32x64xbf16>
    %97 = vector.shape_cast %96 : vector<1x32x64xbf16> to vector<32x64xbf16>
    %cst_39 = arith.constant dense<0.000000e+00> : vector<16x64xf32>
    %98 = tpu.matmul %95, %97, %cst_39 {dimension_numbers = #tpu.dot_dimension_numbers<[1], [0], [0], [1], [0, 0, 1, 1], [], []>} : vector<16x32xbf16>, vector<32x64xbf16>, vector<16x64xf32> -> vector<16x64xf32>
    %c0_40 = arith.constant 0 : index
    %c0_41 = arith.constant 0 : index
    %c0_42 = arith.constant 0 : index
    %99 = vector.load %arg12[%c0_40, %c0_41, %c0_42] : memref<1x1x64xf32, #tpu.memory_space<vmem>>, vector<1x1x64xf32>
    %100 = vector.shape_cast %99 : vector<1x1x64xf32> to vector<1x64xf32>
    %101 = vector.broadcast %100 : vector<1x64xf32> to vector<16x64xf32>
    %102 = arith.addf %98, %101 : vector<16x64xf32>
    %cst_43 = arith.constant 5.000000e-01 : f32
    %103 = vector.broadcast %cst_43 : f32 to vector<16x64xf32>
    %104 = arith.mulf %103, %102 : vector<16x64xf32>
    %cst_44 = arith.constant 4.471500e-02 : f32
    %105 = vector.broadcast %cst_44 : f32 to vector<16x64xf32>
    %106 = arith.mulf %105, %102 : vector<16x64xf32>
    %107 = arith.mulf %106, %102 : vector<16x64xf32>
    %108 = arith.mulf %107, %102 : vector<16x64xf32>
    %109 = arith.addf %102, %108 : vector<16x64xf32>
    %cst_45 = arith.constant 0.797884583 : f32
    %110 = vector.broadcast %cst_45 : f32 to vector<16x64xf32>
    %111 = arith.mulf %110, %109 : vector<16x64xf32>
    %112 = math.tanh %111 : vector<16x64xf32>
    %cst_46 = arith.constant 1.000000e+00 : f32
    %113 = vector.broadcast %cst_46 : f32 to vector<16x64xf32>
    %114 = arith.addf %113, %112 : vector<16x64xf32>
    %115 = arith.mulf %104, %114 : vector<16x64xf32>
    %116 = arith.truncf %115 : vector<16x64xf32> to vector<16x64xbf16>
    %c0_47 = arith.constant 0 : index
    %c0_48 = arith.constant 0 : index
    %c0_49 = arith.constant 0 : index
    %117 = vector.load %arg13[%c0_47, %c0_48, %c0_49] : memref<1x64x32xbf16, #tpu.memory_space<vmem>>, vector<1x64x32xbf16>
    %118 = vector.shape_cast %117 : vector<1x64x32xbf16> to vector<64x32xbf16>
    %cst_50 = arith.constant dense<0.000000e+00> : vector<16x32xf32>
    %119 = tpu.matmul %116, %118, %cst_50 {dimension_numbers = #tpu.dot_dimension_numbers<[1], [0], [0], [1], [0, 0, 1, 1], [], []>} : vector<16x64xbf16>, vector<64x32xbf16>, vector<16x32xf32> -> vector<16x32xf32>
    %c0_51 = arith.constant 0 : index
    %c0_52 = arith.constant 0 : index
    %c0_53 = arith.constant 0 : index
    %120 = vector.load %arg14[%c0_51, %c0_52, %c0_53] : memref<1x1x32xf32, #tpu.memory_space<vmem>>, vector<1x1x32xf32>
    %121 = vector.shape_cast %120 : vector<1x1x32xf32> to vector<1x32xf32>
    %122 = vector.broadcast %121 : vector<1x32xf32> to vector<16x32xf32>
    %123 = arith.addf %119, %122 : vector<16x32xf32>
    %124 = arith.addf %123, %94 : vector<16x32xf32>
    %c0_54 = arith.constant 0 : index
    %c0_55 = arith.constant 0 : index
    %c0_56 = arith.constant 0 : index
    %125 = vector.load %arg15[%c0_54, %c0_55, %c0_56] : memref<1x1x32xf32, #tpu.memory_space<vmem>>, vector<1x1x32xf32>
    %126 = vector.shape_cast %125 : vector<1x1x32xf32> to vector<1x32xf32>
    %c0_57 = arith.constant 0 : index
    %c0_58 = arith.constant 0 : index
    %c0_59 = arith.constant 0 : index
    %127 = vector.load %arg16[%c0_57, %c0_58, %c0_59] : memref<1x1x32xf32, #tpu.memory_space<vmem>>, vector<1x1x32xf32>
    %128 = vector.shape_cast %127 : vector<1x1x32xf32> to vector<1x32xf32>
    %cst_60 = arith.constant dense<0.000000e+00> : vector<16xf32>
    %129 = vector.multi_reduction <add>, %124, %cst_60 [1] : vector<16x32xf32> to vector<16xf32>
    %130 = vector.shape_cast %129 : vector<16xf32> to vector<16x1xf32>
    %cst_61 = arith.constant 3.200000e+01 : f32
    %131 = vector.broadcast %cst_61 : f32 to vector<16x1xf32>
    %132 = arith.divf %130, %131 : vector<16x1xf32>
    %133 = vector.broadcast %132 : vector<16x1xf32> to vector<16x32xf32>
    %134 = arith.subf %124, %133 : vector<16x32xf32>
    %135 = arith.mulf %134, %134 : vector<16x32xf32>
    %cst_62 = arith.constant dense<0.000000e+00> : vector<16xf32>
    %136 = vector.multi_reduction <add>, %135, %cst_62 [1] : vector<16x32xf32> to vector<16xf32>
    %137 = vector.shape_cast %136 : vector<16xf32> to vector<16x1xf32>
    %cst_63 = arith.constant 3.200000e+01 : f32
    %138 = vector.broadcast %cst_63 : f32 to vector<16x1xf32>
    %139 = arith.divf %137, %138 : vector<16x1xf32>
    %cst_64 = arith.constant 9.99999996E-13 : f32
    %140 = vector.broadcast %cst_64 : f32 to vector<16x1xf32>
    %141 = arith.addf %139, %140 : vector<16x1xf32>
    %142 = math.rsqrt %141 : vector<16x1xf32>
    %143 = vector.broadcast %132 : vector<16x1xf32> to vector<16x32xf32>
    %144 = arith.subf %124, %143 : vector<16x32xf32>
    %145 = vector.broadcast %142 : vector<16x1xf32> to vector<16x32xf32>
    %146 = arith.mulf %144, %145 : vector<16x32xf32>
    %147 = vector.broadcast %126 : vector<1x32xf32> to vector<16x32xf32>
    %148 = arith.mulf %146, %147 : vector<16x32xf32>
    %149 = vector.broadcast %128 : vector<1x32xf32> to vector<16x32xf32>
    %150 = arith.addf %148, %149 : vector<16x32xf32>
    %c0_65 = arith.constant 0 : index
    %c0_66 = arith.constant 0 : index
    %151 = vector.load %arg22[%c0_65, %c0_66] : memref<16x32xf32, #tpu.memory_space<vmem>>, vector<16x32xf32>
    tpu.vector_store %arg22[%c0_65, %c0_66], %150 {strides = array<i32>} : memref<16x32xf32, #tpu.memory_space<vmem>>, vector<16x32xf32>,
    %c1_i32 = arith.constant 1 : i32
    %152 = arith.cmpi eq, %arg0, %c1_i32 : i32
    %153 = arith.extui %152 : i1 to i32
    %c0_i32_67 = arith.constant 0 : i32
    %154 = arith.cmpi ne, %153, %c0_i32_67 : i32
    scf.if %154 {
      %c0_68 = arith.constant 0 : index
      %c0_69 = arith.constant 0 : index
      %155 = tpu.strided_load %arg22[%c0_68, %c0_69] {strides = array<i32: 8, 1>} : memref<16x32xf32, #tpu.memory_space<vmem>>, vector<2x32xf32>
      %156 = arith.truncf %155 : vector<2x32xf32> to vector<2x32xbf16>
      %c0_70 = arith.constant 0 : index
      %c0_71 = arith.constant 0 : index
      %157 = vector.load %arg17[%c0_70, %c0_71] : memref<32x32xbf16, #tpu.memory_space<vmem>>, vector<32x32xbf16>
      %cst_72 = arith.constant dense<0.000000e+00> : vector<2x32xf32>
      %158 = tpu.matmul %156, %157, %cst_72 {dimension_numbers = #tpu.dot_dimension_numbers<[1], [0], [0], [1], [0, 0, 1, 1], [], []>} : vector<2x32xbf16>, vector<32x32xbf16>, vector<2x32xf32> -> vector<2x32xf32>
      %c0_73 = arith.constant 0 : index
      %c0_74 = arith.constant 0 : index
      %159 = vector.load %arg18[%c0_73, %c0_74] : memref<1x32xf32, #tpu.memory_space<vmem>>, vector<1x32xf32>
      %160 = vector.broadcast %159 : vector<1x32xf32> to vector<2x32xf32>
      %161 = arith.addf %158, %160 : vector<2x32xf32>
      %162 = math.tanh %161 : vector<2x32xf32>
      %163 = arith.truncf %162 : vector<2x32xf32> to vector<2x32xbf16>
      %c0_75 = arith.constant 0 : index
      %c0_76 = arith.constant 0 : index
      %164 = vector.load %arg19[%c0_75, %c0_76] : memref<32x128xbf16, #tpu.memory_space<vmem>>, vector<32x128xbf16>
      %cst_77 = arith.constant dense<0.000000e+00> : vector<2x128xf32>
      %165 = tpu.matmul %163, %164, %cst_77 {dimension_numbers = #tpu.dot_dimension_numbers<[1], [0], [0], [1], [0, 0, 1, 1], [], []>} : vector<2x32xbf16>, vector<32x128xbf16>, vector<2x128xf32> -> vector<2x128xf32>
      %c0_78 = arith.constant 0 : index
      %c0_79 = arith.constant 0 : index
      %166 = vector.load %arg20[%c0_78, %c0_79] : memref<1x128xf32, #tpu.memory_space<vmem>>, vector<1x128xf32>
      %167 = vector.broadcast %166 : vector<1x128xf32> to vector<2x128xf32>
      %168 = arith.addf %165, %167 : vector<2x128xf32>
      %c0_80 = arith.constant 0 : index
      %c0_81 = arith.constant 0 : index
      %169 = vector.load %arg21[%c0_80, %c0_81] : memref<2x128xf32, #tpu.memory_space<vmem>>, vector<2x128xf32>
      tpu.vector_store %arg21[%c0_80, %c0_81], %168 {strides = array<i32>} : memref<2x128xf32, #tpu.memory_space<vmem>>, vector<2x128xf32>,
    } else {
    }
    return
  }
  func.func @transform_0(%arg0: i32) -> (i32, i32) {
    %c0_i32 = arith.constant 0 : i32
    %c0_i32_0 = arith.constant 0 : i32
    %c0_i32_1 = arith.constant 0 : i32
    return %c0_i32, %c0_i32_0 : i32, i32
  }
  func.func @transform_1(%arg0: i32) -> (i32, i32) {
    %c0_i32 = arith.constant 0 : i32
    %c0_i32_0 = arith.constant 0 : i32
    %c0_i32_1 = arith.constant 0 : i32
    return %c0_i32, %c0_i32_0 : i32, i32
  }
  func.func @transform_2(%arg0: i32) -> (i32, i32) {
    %c0_i32 = arith.constant 0 : i32
    %c0_i32_0 = arith.constant 0 : i32
    %c0_i32_1 = arith.constant 0 : i32
    return %c0_i32, %c0_i32_0 : i32, i32
  }
  func.func @transform_3(%arg0: i32) -> (i32, i32) {
    %c0_i32 = arith.constant 0 : i32
    %c0_i32_0 = arith.constant 0 : i32
    %c0_i32_1 = arith.constant 0 : i32
    return %c0_i32, %c0_i32_0 : i32, i32
  }
  func.func @transform_4(%arg0: i32) -> (i32, i32, i32) {
    %c0_i32 = arith.constant 0 : i32
    %c0_i32_0 = arith.constant 0 : i32
    %c0_i32_1 = arith.constant 0 : i32
    return %arg0, %c0_i32, %c0_i32_0 : i32, i32, i32
  }
  func.func @transform_5(%arg0: i32) -> (i32, i32, i32) {
    %c0_i32 = arith.constant 0 : i32
    %c0_i32_0 = arith.constant 0 : i32
    %c0_i32_1 = arith.constant 0 : i32
    return %arg0, %c0_i32, %c0_i32_0 : i32, i32, i32
  }
  func.func @transform_6(%arg0: i32) -> (i32, i32, i32) {
    %c0_i32 = arith.constant 0 : i32
    %c0_i32_0 = arith.constant 0 : i32
    %c0_i32_1 = arith.constant 0 : i32
    return %arg0, %c0_i32, %c0_i32_0 : i32, i32, i32
  }
  func.func @transform_7(%arg0: i32) -> (i32, i32, i32) {
    %c0_i32 = arith.constant 0 : i32
    %c0_i32_0 = arith.constant 0 : i32
    %c0_i32_1 = arith.constant 0 : i32
    return %arg0, %c0_i32, %c0_i32_0 : i32, i32, i32
  }
  func.func @transform_8(%arg0: i32) -> (i32, i32, i32) {
    %c0_i32 = arith.constant 0 : i32
    %c0_i32_0 = arith.constant 0 : i32
    %c0_i32_1 = arith.constant 0 : i32
    return %arg0, %c0_i32, %c0_i32_0 : i32, i32, i32
  }
  func.func @transform_9(%arg0: i32) -> (i32, i32, i32) {
    %c0_i32 = arith.constant 0 : i32
    %c0_i32_0 = arith.constant 0 : i32
    %c0_i32_1 = arith.constant 0 : i32
    return %arg0, %c0_i32, %c0_i32_0 : i32, i32, i32
  }
  func.func @transform_10(%arg0: i32) -> (i32, i32, i32) {
    %c0_i32 = arith.constant 0 : i32
    %c0_i32_0 = arith.constant 0 : i32
    %c0_i32_1 = arith.constant 0 : i32
    return %arg0, %c0_i32, %c0_i32_0 : i32, i32, i32
  }
  func.func @transform_11(%arg0: i32) -> (i32, i32, i32) {
    %c0_i32 = arith.constant 0 : i32
    %c0_i32_0 = arith.constant 0 : i32
    %c0_i32_1 = arith.constant 0 : i32
    return %arg0, %c0_i32, %c0_i32_0 : i32, i32, i32
  }
  func.func @transform_12(%arg0: i32) -> (i32, i32, i32) {
    %c0_i32 = arith.constant 0 : i32
    %c0_i32_0 = arith.constant 0 : i32
    %c0_i32_1 = arith.constant 0 : i32
    return %arg0, %c0_i32, %c0_i32_0 : i32, i32, i32
  }
  func.func @transform_13(%arg0: i32) -> (i32, i32, i32) {
    %c0_i32 = arith.constant 0 : i32
    %c0_i32_0 = arith.constant 0 : i32
    %c0_i32_1 = arith.constant 0 : i32
    return %arg0, %c0_i32, %c0_i32_0 : i32, i32, i32
  }
  func.func @transform_14(%arg0: i32) -> (i32, i32, i32) {
    %c0_i32 = arith.constant 0 : i32
    %c0_i32_0 = arith.constant 0 : i32
    %c0_i32_1 = arith.constant 0 : i32
    return %arg0, %c0_i32, %c0_i32_0 : i32, i32, i32
  }
  func.func @transform_15(%arg0: i32) -> (i32, i32, i32) {
    %c0_i32 = arith.constant 0 : i32
    %c0_i32_0 = arith.constant 0 : i32
    %c0_i32_1 = arith.constant 0 : i32
    return %arg0, %c0_i32, %c0_i32_0 : i32, i32, i32
  }
  func.func @transform_16(%arg0: i32) -> (i32, i32) {
    %c0_i32 = arith.constant 0 : i32
    %c0_i32_0 = arith.constant 0 : i32
    %c0_i32_1 = arith.constant 0 : i32
    return %c0_i32, %c0_i32_0 : i32, i32
  }
  func.func @transform_17(%arg0: i32) -> (i32, i32) {
    %c0_i32 = arith.constant 0 : i32
    %c0_i32_0 = arith.constant 0 : i32
    %c0_i32_1 = arith.constant 0 : i32
    return %c0_i32, %c0_i32_0 : i32, i32
  }
  func.func @transform_18(%arg0: i32) -> (i32, i32) {
    %c0_i32 = arith.constant 0 : i32
    %c0_i32_0 = arith.constant 0 : i32
    %c0_i32_1 = arith.constant 0 : i32
    return %c0_i32, %c0_i32_0 : i32, i32
  }
  func.func @transform_19(%arg0: i32) -> (i32, i32) {
    %c0_i32 = arith.constant 0 : i32
    %c0_i32_0 = arith.constant 0 : i32
    %c0_i32_1 = arith.constant 0 : i32
    return %c0_i32, %c0_i32_0 : i32, i32
  }
  func.func @transform_20(%arg0: i32) -> (i32, i32) {
    %c0_i32 = arith.constant 0 : i32
    %c0_i32_0 = arith.constant 0 : i32
    %c0_i32_1 = arith.constant 0 : i32
    return %c0_i32, %c0_i32_0 : i32, i32
  }
}

</mosaic_0001>

<llo_original>
// kernel: bert_multilabel_forward.1
$region0: #{bert_multilabel_forward.1}
  #allocation0 [shape = 'u32[]', space=smem, size = 0x4, offset = 0x4, fixed_abs, tag = 'smem constant byte address 0x4 - core index']
  #allocation1 [shape = 'u32[144,128]{1,0:T(1,128)}', space=vmem, size = 0x12000, scoped, tag = 'internal scratch']
  #allocation2 [shape = 'f32[16,32]{1,0:T(8,128)}', space=vmem, size = 0x2000, scoped, tag = 'scratch operand']
  %s0 = inlined_call_operand.vmem [shape: f32[16,32], index: 0, kind: input, shape index: {}]
  %s1 = inlined_call_operand.vmem [shape: f32[2,8], index: 1, kind: input, shape index: {}]
  %s2 = inlined_call_operand.vmem [shape: f32[1,32], index: 2, kind: input, shape index: {}]
  %s3 = inlined_call_operand.vmem [shape: f32[1,32], index: 3, kind: input, shape index: {}]
  %s4 = inlined_call_operand.vmem [shape: bf16[2,32,96], index: 4, kind: input, shape index: {}]
  %s5 = inlined_call_operand.vmem [shape: f32[2,1,96], index: 5, kind: input, shape index: {}]
  %s6 = inlined_call_operand.vmem [shape: bf16[2,32,32], index: 6, kind: input, shape index: {}]
  %s7 = inlined_call_operand.vmem [shape: f32[2,1,32], index: 7, kind: input, shape index: {}]
  %s8 = inlined_call_operand.vmem [shape: f32[2,1,32], index: 8, kind: input, shape index: {}]
  %s9 = inlined_call_operand.vmem [shape: f32[2,1,32], index: 9, kind: input, shape index: {}]
  %s10 = inlined_call_operand.vmem [shape: bf16[2,32,64], index: 10, kind: input, shape index: {}]
  %s11 = inlined_call_operand.vmem [shape: f32[2,1,64], index: 11, kind: input, shape index: {}]
  %s12 = inlined_call_operand.vmem [shape: bf16[2,64,32], index: 12, kind: input, shape index: {}]
  %s13 = inlined_call_operand.vmem [shape: f32[2,1,32], index: 13, kind: input, shape index: {}]
  %s14 = inlined_call_operand.vmem [shape: f32[2,1,32], index: 14, kind: input, shape index: {}]
  %s15 = inlined_call_operand.vmem [shape: f32[2,1,32], index: 15, kind: input, shape index: {}]
  %s16 = inlined_call_operand.vmem [shape: bf16[32,32], index: 16, kind: input, shape index: {}]
  %s17 = inlined_call_operand.vmem [shape: f32[1,32], index: 17, kind: input, shape index: {}]
  %s18 = inlined_call_operand.vmem [shape: bf16[32,128], index: 18, kind: input, shape index: {}]
  %s19 = inlined_call_operand.vmem [shape: f32[1,128], index: 19, kind: input, shape index: {}]
  %s20 = inlined_call_operand.hbm [shape: f32[2,128], index: 20, kind: output, shape index: {}]
  %s21 = sld [smem:[#allocation0]]
  $region121: #{bert_multilabel_forward.1} parent=0
    _
  %s23 = ssub.s32 1, %s21
  %s24 = scalar_select 0, %s23, %s21
  $region1: #{bert_multilabel_forward.1} parent=0
    #allocation3 [shape = 'u8[1024]{0}', space=vmem, size = 0x400, scoped, tag = 'output window, operand 0, single buffered']
    #allocation4 [shape = 's32[2]{0}', space=sflag, size = 0x8, scoped, tag = 'scoped memory for bert_multilabel_forward.1']
    %25 = vsyncpa [#allocation4], 0
    loop: start=0, step=1, limit=4
    $region2: #{bert_multilabel_forward.1} parent=1 // loop_pre_header
      _
    $region3: #{bert_multilabel_forward.1} parent=1 // loop_header
      %s27 = sphi 0, %s31
      %p28 = scmp.ge.s32.totalorder %s27, 4
      %s35 = sphi 0, %s35
      %s37 = sphi 0, %s35
      %s38 = sphi 0, %s37
      %s52 = sphi 0, %s38
      %s56 = sphi 0, %s56
      %s58 = sphi 0, %s56
      %s59 = sphi 0, %s58
      %s73 = sphi 0, %s59
      %s77 = sphi 0, %s77
      %s79 = sphi 0, %s77
      %s80 = sphi 0, %s79
      %s94 = sphi 0, %s80
      %s98 = sphi 0, %s98
      %s100 = sphi 0, %s98
      %s101 = sphi 0, %s100
      %s115 = sphi 0, %s101
      %s121 = sphi 0, %s123
      %s124 = sphi 0, %s121
      %s125 = sphi 0, %s124
      %s141 = sphi 0, %s125
      %s147 = sphi 0, %s149
      %s150 = sphi 0, %s147
      %s151 = sphi 0, %s150
      %s167 = sphi 0, %s151
      %s173 = sphi 0, %s175
      %s176 = sphi 0, %s173
      %s177 = sphi 0, %s176
      %s193 = sphi 0, %s177
      %s199 = sphi 0, %s201
      %s202 = sphi 0, %s199
      %s203 = sphi 0, %s202
      %s219 = sphi 0, %s203
      %s225 = sphi 0, %s227
      %s228 = sphi 0, %s225
      %s229 = sphi 0, %s228
      %s245 = sphi 0, %s229
      %s251 = sphi 0, %s253
      %s254 = sphi 0, %s251
      %s255 = sphi 0, %s254
      %s271 = sphi 0, %s255
      %s277 = sphi 0, %s279
      %s280 = sphi 0, %s277
      %s281 = sphi 0, %s280
      %s297 = sphi 0, %s281
      %s303 = sphi 0, %s305
      %s306 = sphi 0, %s303
      %s307 = sphi 0, %s306
      %s323 = sphi 0, %s307
      %s329 = sphi 0, %s331
      %s332 = sphi 0, %s329
      %s333 = sphi 0, %s332
      %s349 = sphi 0, %s333
      %s355 = sphi 0, %s357
      %s358 = sphi 0, %s355
      %s359 = sphi 0, %s358
      %s375 = sphi 0, %s359
      %s381 = sphi 0, %s383
      %s384 = sphi 0, %s381
      %s385 = sphi 0, %s384
      %s401 = sphi 0, %s385
      %s407 = sphi 0, %s409
      %s410 = sphi 0, %s407
      %s411 = sphi 0, %s410
      %s427 = sphi 0, %s411
      %s431 = sphi 0, %s431
      %s433 = sphi 0, %s431
      %s434 = sphi 0, %s433
      %s448 = sphi 0, %s434
      %s452 = sphi 0, %s452
      %s454 = sphi 0, %s452
      %s455 = sphi 0, %s454
      %s469 = sphi 0, %s455
      %s473 = sphi 0, %s473
      %s475 = sphi 0, %s473
      %s476 = sphi 0, %s475
      %s490 = sphi 0, %s476
      %s494 = sphi 0, %s494
      %s496 = sphi 0, %s494
      %s497 = sphi 0, %s496
      %s511 = sphi 0, %s497
      %s515 = sphi 0, %s515
      %s517 = sphi 0, %s515
      %s518 = sphi 0, %s517
      %s532 = sphi 0, %s518
    $region4: #{bert_multilabel_forward.1} parent=1 // loop_header_branch
      %30 = sbr.rel (%p28) target = $region8
    $region5: #{bert_multilabel_forward.1} parent=1 // loop_body
      %s32 = ssub.s32 %s27, 1
      %s33 = ssub.s32 %s27, 2
      %s34 = sadd.s32 %s27, 1
      %s36 = sadd.s32 %s35, 1
      %p39 = scmp.eq.s32.totalorder %s27, 1
      %p40 = scmp.ne.s32.totalorder %s35, %s37
      %p41 = scmp.eq.s32.totalorder %s27, 0
      %p42 = por %p40, %p41
      %p43 = scmp.ne.s32.totalorder %s35, %s37
      %p44 = scmp.eq.s32.totalorder %s32, 1
      %p45 = por %p43, %p44
      %p46 = scmp.ne.s32.totalorder %s37, %s38
      %p47 = scmp.eq.s32.totalorder %s32, 0
      %p48 = por %p46, %p47
      %p49 = scmp.ne.s32.totalorder %s37, %s38
      %p50 = scmp.eq.s32.totalorder %s33, 1
      %p51 = por %p49, %p50
      %p53 = scmp.ne.s32.totalorder %s38, %s52
      %p54 = scmp.eq.s32.totalorder %s33, 0
      %p55 = por %p53, %p54
      %s57 = sadd.s32 %s56, 1
      %p60 = scmp.eq.s32.totalorder %s27, 1
      %p61 = scmp.ne.s32.totalorder %s56, %s58
      %p62 = scmp.eq.s32.totalorder %s27, 0
      %p63 = por %p61, %p62
      %p64 = scmp.ne.s32.totalorder %s56, %s58
      %p65 = scmp.eq.s32.totalorder %s32, 1
      %p66 = por %p64, %p65
      %p67 = scmp.ne.s32.totalorder %s58, %s59
      %p68 = scmp.eq.s32.totalorder %s32, 0
      %p69 = por %p67, %p68
      %p70 = scmp.ne.s32.totalorder %s58, %s59
      %p71 = scmp.eq.s32.totalorder %s33, 1
      %p72 = por %p70, %p71
      %p74 = scmp.ne.s32.totalorder %s59, %s73
      %p75 = scmp.eq.s32.totalorder %s33, 0
      %p76 = por %p74, %p75
      %s78 = sadd.s32 %s77, 1
      %p81 = scmp.eq.s32.totalorder %s27, 1
      %p82 = scmp.ne.s32.totalorder %s77, %s79
      %p83 = scmp.eq.s32.totalorder %s27, 0
      %p84 = por %p82, %p83
      %p85 = scmp.ne.s32.totalorder %s77, %s79
      %p86 = scmp.eq.s32.totalorder %s32, 1
      %p87 = por %p85, %p86
      %p88 = scmp.ne.s32.totalorder %s79, %s80
      %p89 = scmp.eq.s32.totalorder %s32, 0
      %p90 = por %p88, %p89
      %p91 = scmp.ne.s32.totalorder %s79, %s80
      %p92 = scmp.eq.s32.totalorder %s33, 1
      %p93 = por %p91, %p92
      %p95 = scmp.ne.s32.totalorder %s80, %s94
      %p96 = scmp.eq.s32.totalorder %s33, 0
      %p97 = por %p95, %p96
      %s99 = sadd.s32 %s98, 1
      %p102 = scmp.eq.s32.totalorder %s27, 1
      %p103 = scmp.ne.s32.totalorder %s98, %s100
      %p104 = scmp.eq.s32.totalorder %s27, 0
      %p105 = por %p103, %p104
      %p106 = scmp.ne.s32.totalorder %s98, %s100
      %p107 = scmp.eq.s32.totalorder %s32, 1
      %p108 = por %p106, %p107
      %p109 = scmp.ne.s32.totalorder %s100, %s101
      %p110 = scmp.eq.s32.totalorder %s32, 0
      %p111 = por %p109, %p110
      %p112 = scmp.ne.s32.totalorder %s100, %s101
      %p113 = scmp.eq.s32.totalorder %s33, 1
      %p114 = por %p112, %p113
      %p116 = scmp.ne.s32.totalorder %s101, %s115
      %p117 = scmp.eq.s32.totalorder %s33, 0
      %p118 = por %p116, %p117
      %s119 = ssub.s32 %s27, %s34
      %p120 = scmp.eq.s32.totalorder %s119, 0
      %s122 = sadd.s32 %s121, 1
      %s123 = scalar_select %p120, %s121, %s122
      %p126 = pneg %p120
      %p127 = scmp.eq.s32.totalorder %s27, 1
      %p128 = por %p126, %p127
      %p129 = scmp.ne.s32.totalorder %s121, %s124
      %p130 = scmp.eq.s32.totalorder %s27, 0
      %p131 = por %p129, %p130
      %p132 = scmp.ne.s32.totalorder %s121, %s124
      %p133 = scmp.eq.s32.totalorder %s32, 1
      %p134 = por %p132, %p133
      %p135 = scmp.ne.s32.totalorder %s124, %s125
      %p136 = scmp.eq.s32.totalorder %s32, 0
      %p137 = por %p135, %p136
      %p138 = scmp.ne.s32.totalorder %s124, %s125
      %p139 = scmp.eq.s32.totalorder %s33, 1
      %p140 = por %p138, %p139
      %p142 = scmp.ne.s32.totalorder %s125, %s141
      %p143 = scmp.eq.s32.totalorder %s33, 0
      %p144 = por %p142, %p143
      %s145 = ssub.s32 %s27, %s34
      %p146 = scmp.eq.s32.totalorder %s145, 0
      %s148 = sadd.s32 %s147, 1
      %s149 = scalar_select %p146, %s147, %s148
      %p152 = pneg %p146
      %p153 = scmp.eq.s32.totalorder %s27, 1
      %p154 = por %p152, %p153
      %p155 = scmp.ne.s32.totalorder %s147, %s150
      %p156 = scmp.eq.s32.totalorder %s27, 0
      %p157 = por %p155, %p156
      %p158 = scmp.ne.s32.totalorder %s147, %s150
      %p159 = scmp.eq.s32.totalorder %s32, 1
      %p160 = por %p158, %p159
      %p161 = scmp.ne.s32.totalorder %s150, %s151
      %p162 = scmp.eq.s32.totalorder %s32, 0
      %p163 = por %p161, %p162
      %p164 = scmp.ne.s32.totalorder %s150, %s151
      %p165 = scmp.eq.s32.totalorder %s33, 1
      %p166 = por %p164, %p165
      %p168 = scmp.ne.s32.totalorder %s151, %s167
      %p169 = scmp.eq.s32.totalorder %s33, 0
      %p170 = por %p168, %p169
      %s171 = ssub.s32 %s27, %s34
      %p172 = scmp.eq.s32.totalorder %s171, 0
      %s174 = sadd.s32 %s173, 1
      %s175 = scalar_select %p172, %s173, %s174
      %p178 = pneg %p172
      %p179 = scmp.eq.s32.totalorder %s27, 1
      %p180 = por %p178, %p179
      %p181 = scmp.ne.s32.totalorder %s173, %s176
      %p182 = scmp.eq.s32.totalorder %s27, 0
      %p183 = por %p181, %p182
      %p184 = scmp.ne.s32.totalorder %s173, %s176
      %p185 = scmp.eq.s32.totalorder %s32, 1
      %p186 = por %p184, %p185
      %p187 = scmp.ne.s32.totalorder %s176, %s177
      %p188 = scmp.eq.s32.totalorder %s32, 0
      %p189 = por %p187, %p188
      %p190 = scmp.ne.s32.totalorder %s176, %s177
      %p191 = scmp.eq.s32.totalorder %s33, 1
      %p192 = por %p190, %p191
      %p194 = scmp.ne.s32.totalorder %s177, %s193
      %p195 = scmp.eq.s32.totalorder %s33, 0
      %p196 = por %p194, %p195
      %s197 = ssub.s32 %s27, %s34
      %p198 = scmp.eq.s32.totalorder %s197, 0
      %s200 = sadd.s32 %s199, 1
      %s201 = scalar_select %p198, %s199, %s200
      %p204 = pneg %p198
      %p205 = scmp.eq.s32.totalorder %s27, 1
      %p206 = por %p204, %p205
      %p207 = scmp.ne.s32.totalorder %s199, %s202
      %p208 = scmp.eq.s32.totalorder %s27, 0
      %p209 = por %p207, %p208
      %p210 = scmp.ne.s32.totalorder %s199, %s202
      %p211 = scmp.eq.s32.totalorder %s32, 1
      %p212 = por %p210, %p211
      %p213 = scmp.ne.s32.totalorder %s202, %s203
      %p214 = scmp.eq.s32.totalorder %s32, 0
      %p215 = por %p213, %p214
      %p216 = scmp.ne.s32.totalorder %s202, %s203
      %p217 = scmp.eq.s32.totalorder %s33, 1
      %p218 = por %p216, %p217
      %p220 = scmp.ne.s32.totalorder %s203, %s219
      %p221 = scmp.eq.s32.totalorder %s33, 0
      %p222 = por %p220, %p221
      %s223 = ssub.s32 %s27, %s34
      %p224 = scmp.eq.s32.totalorder %s223, 0
      %s226 = sadd.s32 %s225, 1
      %s227 = scalar_select %p224, %s225, %s226
      %p230 = pneg %p224
      %p231 = scmp.eq.s32.totalorder %s27, 1
      %p232 = por %p230, %p231
      %p233 = scmp.ne.s32.totalorder %s225, %s228
      %p234 = scmp.eq.s32.totalorder %s27, 0
      %p235 = por %p233, %p234
      %p236 = scmp.ne.s32.totalorder %s225, %s228
      %p237 = scmp.eq.s32.totalorder %s32, 1
      %p238 = por %p236, %p237
      %p239 = scmp.ne.s32.totalorder %s228, %s229
      %p240 = scmp.eq.s32.totalorder %s32, 0
      %p241 = por %p239, %p240
      %p242 = scmp.ne.s32.totalorder %s228, %s229
      %p243 = scmp.eq.s32.totalorder %s33, 1
      %p244 = por %p242, %p243
      %p246 = scmp.ne.s32.totalorder %s229, %s245
      %p247 = scmp.eq.s32.totalorder %s33, 0
      %p248 = por %p246, %p247
      %s249 = ssub.s32 %s27, %s34
      %p250 = scmp.eq.s32.totalorder %s249, 0
      %s252 = sadd.s32 %s251, 1
      %s253 = scalar_select %p250, %s251, %s252
      %p256 = pneg %p250
      %p257 = scmp.eq.s32.totalorder %s27, 1
      %p258 = por %p256, %p257
      %p259 = scmp.ne.s32.totalorder %s251, %s254
      %p260 = scmp.eq.s32.totalorder %s27, 0
      %p261 = por %p259, %p260
      %p262 = scmp.ne.s32.totalorder %s251, %s254
      %p263 = scmp.eq.s32.totalorder %s32, 1
      %p264 = por %p262, %p263
      %p265 = scmp.ne.s32.totalorder %s254, %s255
      %p266 = scmp.eq.s32.totalorder %s32, 0
      %p267 = por %p265, %p266
      %p268 = scmp.ne.s32.totalorder %s254, %s255
      %p269 = scmp.eq.s32.totalorder %s33, 1
      %p270 = por %p268, %p269
      %p272 = scmp.ne.s32.totalorder %s255, %s271
      %p273 = scmp.eq.s32.totalorder %s33, 0
      %p274 = por %p272, %p273
      %s275 = ssub.s32 %s27, %s34
      %p276 = scmp.eq.s32.totalorder %s275, 0
      %s278 = sadd.s32 %s277, 1
      %s279 = scalar_select %p276, %s277, %s278
      %p282 = pneg %p276
      %p283 = scmp.eq.s32.totalorder %s27, 1
      %p284 = por %p282, %p283
      %p285 = scmp.ne.s32.totalorder %s277, %s280
      %p286 = scmp.eq.s32.totalorder %s27, 0
      %p287 = por %p285, %p286
      %p288 = scmp.ne.s32.totalorder %s277, %s280
      %p289 = scmp.eq.s32.totalorder %s32, 1
      %p290 = por %p288, %p289
      %p291 = scmp.ne.s32.totalorder %s280, %s281
      %p292 = scmp.eq.s32.totalorder %s32, 0
      %p293 = por %p291, %p292
      %p294 = scmp.ne.s32.totalorder %s280, %s281
      %p295 = scmp.eq.s32.totalorder %s33, 1
      %p296 = por %p294, %p295
      %p298 = scmp.ne.s32.totalorder %s281, %s297
      %p299 = scmp.eq.s32.totalorder %s33, 0
      %p300 = por %p298, %p299
      %s301 = ssub.s32 %s27, %s34
      %p302 = scmp.eq.s32.totalorder %s301, 0
      %s304 = sadd.s32 %s303, 1
      %s305 = scalar_select %p302, %s303, %s304
      %p308 = pneg %p302
      %p309 = scmp.eq.s32.totalorder %s27, 1
      %p310 = por %p308, %p309
      %p311 = scmp.ne.s32.totalorder %s303, %s306
      %p312 = scmp.eq.s32.totalorder %s27, 0
      %p313 = por %p311, %p312
      %p314 = scmp.ne.s32.totalorder %s303, %s306
      %p315 = scmp.eq.s32.totalorder %s32, 1
      %p316 = por %p314, %p315
      %p317 = scmp.ne.s32.totalorder %s306, %s307
      %p318 = scmp.eq.s32.totalorder %s32, 0
      %p319 = por %p317, %p318
      %p320 = scmp.ne.s32.totalorder %s306, %s307
      %p321 = scmp.eq.s32.totalorder %s33, 1
      %p322 = por %p320, %p321
      %p324 = scmp.ne.s32.totalorder %s307, %s323
      %p325 = scmp.eq.s32.totalorder %s33, 0
      %p326 = por %p324, %p325
      %s327 = ssub.s32 %s27, %s34
      %p328 = scmp.eq.s32.totalorder %s327, 0
      %s330 = sadd.s32 %s329, 1
      %s331 = scalar_select %p328, %s329, %s330
      %p334 = pneg %p328
      %p335 = scmp.eq.s32.totalorder %s27, 1
      %p336 = por %p334, %p335
      %p337 = scmp.ne.s32.totalorder %s329, %s332
      %p338 = scmp.eq.s32.totalorder %s27, 0
      %p339 = por %p337, %p338
      %p340 = scmp.ne.s32.totalorder %s329, %s332
      %p341 = scmp.eq.s32.totalorder %s32, 1
      %p342 = por %p340, %p341
      %p343 = scmp.ne.s32.totalorder %s332, %s333
      %p344 = scmp.eq.s32.totalorder %s32, 0
      %p345 = por %p343, %p344
      %p346 = scmp.ne.s32.totalorder %s332, %s333
      %p347 = scmp.eq.s32.totalorder %s33, 1
      %p348 = por %p346, %p347
      %p350 = scmp.ne.s32.totalorder %s333, %s349
      %p351 = scmp.eq.s32.totalorder %s33, 0
      %p352 = por %p350, %p351
      %s353 = ssub.s32 %s27, %s34
      %p354 = scmp.eq.s32.totalorder %s353, 0
      %s356 = sadd.s32 %s355, 1
      %s357 = scalar_select %p354, %s355, %s356
      %p360 = pneg %p354
      %p361 = scmp.eq.s32.totalorder %s27, 1
      %p362 = por %p360, %p361
      %p363 = scmp.ne.s32.totalorder %s355, %s358
      %p364 = scmp.eq.s32.totalorder %s27, 0
      %p365 = por %p363, %p364
      %p366 = scmp.ne.s32.totalorder %s355, %s358
      %p367 = scmp.eq.s32.totalorder %s32, 1
      %p368 = por %p366, %p367
      %p369 = scmp.ne.s32.totalorder %s358, %s359
      %p370 = scmp.eq.s32.totalorder %s32, 0
      %p371 = por %p369, %p370
      %p372 = scmp.ne.s32.totalorder %s358, %s359
      %p373 = scmp.eq.s32.totalorder %s33, 1
      %p374 = por %p372, %p373
      %p376 = scmp.ne.s32.totalorder %s359, %s375
      %p377 = scmp.eq.s32.totalorder %s33, 0
      %p378 = por %p376, %p377
      %s379 = ssub.s32 %s27, %s34
      %p380 = scmp.eq.s32.totalorder %s379, 0
      %s382 = sadd.s32 %s381, 1
      %s383 = scalar_select %p380, %s381, %s382
      %p386 = pneg %p380
      %p387 = scmp.eq.s32.totalorder %s27, 1
      %p388 = por %p386, %p387
      %p389 = scmp.ne.s32.totalorder %s381, %s384
      %p390 = scmp.eq.s32.totalorder %s27, 0
      %p391 = por %p389, %p390
      %p392 = scmp.ne.s32.totalorder %s381, %s384
      %p393 = scmp.eq.s32.totalorder %s32, 1
      %p394 = por %p392, %p393
      %p395 = scmp.ne.s32.totalorder %s384, %s385
      %p396 = scmp.eq.s32.totalorder %s32, 0
      %p397 = por %p395, %p396
      %p398 = scmp.ne.s32.totalorder %s384, %s385
      %p399 = scmp.eq.s32.totalorder %s33, 1
      %p400 = por %p398, %p399
      %p402 = scmp.ne.s32.totalorder %s385, %s401
      %p403 = scmp.eq.s32.totalorder %s33, 0
      %p404 = por %p402, %p403
      %s405 = ssub.s32 %s27, %s34
      %p406 = scmp.eq.s32.totalorder %s405, 0
      %s408 = sadd.s32 %s407, 1
      %s409 = scalar_select %p406, %s407, %s408
      %p412 = pneg %p406
      %p413 = scmp.eq.s32.totalorder %s27, 1
      %p414 = por %p412, %p413
      %p415 = scmp.ne.s32.totalorder %s407, %s410
      %p416 = scmp.eq.s32.totalorder %s27, 0
      %p417 = por %p415, %p416
      %p418 = scmp.ne.s32.totalorder %s407, %s410
      %p419 = scmp.eq.s32.totalorder %s32, 1
      %p420 = por %p418, %p419
      %p421 = scmp.ne.s32.totalorder %s410, %s411
      %p422 = scmp.eq.s32.totalorder %s32, 0
      %p423 = por %p421, %p422
      %p424 = scmp.ne.s32.totalorder %s410, %s411
      %p425 = scmp.eq.s32.totalorder %s33, 1
      %p426 = por %p424, %p425
      %p428 = scmp.ne.s32.totalorder %s411, %s427
      %p429 = scmp.eq.s32.totalorder %s33, 0
      %p430 = por %p428, %p429
      %s432 = sadd.s32 %s431, 1
      %p435 = scmp.eq.s32.totalorder %s27, 1
      %p436 = scmp.ne.s32.totalorder %s431, %s433
      %p437 = scmp.eq.s32.totalorder %s27, 0
      %p438 = por %p436, %p437
      %p439 = scmp.ne.s32.totalorder %s431, %s433
      %p440 = scmp.eq.s32.totalorder %s32, 1
      %p441 = por %p439, %p440
      %p442 = scmp.ne.s32.totalorder %s433, %s434
      %p443 = scmp.eq.s32.totalorder %s32, 0
      %p444 = por %p442, %p443
      %p445 = scmp.ne.s32.totalorder %s433, %s434
      %p446 = scmp.eq.s32.totalorder %s33, 1
      %p447 = por %p445, %p446
      %p449 = scmp.ne.s32.totalorder %s434, %s448
      %p450 = scmp.eq.s32.totalorder %s33, 0
      %p451 = por %p449, %p450
      %s453 = sadd.s32 %s452, 1
      %p456 = scmp.eq.s32.totalorder %s27, 1
      %p457 = scmp.ne.s32.totalorder %s452, %s454
      %p458 = scmp.eq.s32.totalorder %s27, 0
      %p459 = por %p457, %p458
      %p460 = scmp.ne.s32.totalorder %s452, %s454
      %p461 = scmp.eq.s32.totalorder %s32, 1
      %p462 = por %p460, %p461
      %p463 = scmp.ne.s32.totalorder %s454, %s455
      %p464 = scmp.eq.s32.totalorder %s32, 0
      %p465 = por %p463, %p464
      %p466 = scmp.ne.s32.totalorder %s454, %s455
      %p467 = scmp.eq.s32.totalorder %s33, 1
      %p468 = por %p466, %p467
      %p470 = scmp.ne.s32.totalorder %s455, %s469
      %p471 = scmp.eq.s32.totalorder %s33, 0
      %p472 = por %p470, %p471
      %s474 = sadd.s32 %s473, 1
      %p477 = scmp.eq.s32.totalorder %s27, 1
      %p478 = scmp.ne.s32.totalorder %s473, %s475
      %p479 = scmp.eq.s32.totalorder %s27, 0
      %p480 = por %p478, %p479
      %p481 = scmp.ne.s32.totalorder %s473, %s475
      %p482 = scmp.eq.s32.totalorder %s32, 1
      %p483 = por %p481, %p482
      %p484 = scmp.ne.s32.totalorder %s475, %s476
      %p485 = scmp.eq.s32.totalorder %s32, 0
      %p486 = por %p484, %p485
      %p487 = scmp.ne.s32.totalorder %s475, %s476
      %p488 = scmp.eq.s32.totalorder %s33, 1
      %p489 = por %p487, %p488
      %p491 = scmp.ne.s32.totalorder %s476, %s490
      %p492 = scmp.eq.s32.totalorder %s33, 0
      %p493 = por %p491, %p492
      %s495 = sadd.s32 %s494, 1
      %p498 = scmp.eq.s32.totalorder %s27, 1
      %p499 = scmp.ne.s32.totalorder %s494, %s496
      %p500 = scmp.eq.s32.totalorder %s27, 0
      %p501 = por %p499, %p500
      %p502 = scmp.ne.s32.totalorder %s494, %s496
      %p503 = scmp.eq.s32.totalorder %s32, 1
      %p504 = por %p502, %p503
      %p505 = scmp.ne.s32.totalorder %s496, %s497
      %p506 = scmp.eq.s32.totalorder %s32, 0
      %p507 = por %p505, %p506
      %p508 = scmp.ne.s32.totalorder %s496, %s497
      %p509 = scmp.eq.s32.totalorder %s33, 1
      %p510 = por %p508, %p509
      %p512 = scmp.ne.s32.totalorder %s497, %s511
      %p513 = scmp.eq.s32.totalorder %s33, 0
      %p514 = por %p512, %p513
      %s516 = sadd.s32 %s515, 1
      %p519 = scmp.eq.s32.totalorder %s27, 1
      %p520 = scmp.ne.s32.totalorder %s515, %s517
      %p521 = scmp.eq.s32.totalorder %s27, 0
      %p522 = por %p520, %p521
      %p523 = scmp.ne.s32.totalorder %s515, %s517
      %p524 = scmp.eq.s32.totalorder %s32, 1
      %p525 = por %p523, %p524
      %p526 = scmp.ne.s32.totalorder %s517, %s518
      %p527 = scmp.eq.s32.totalorder %s32, 0
      %p528 = por %p526, %p527
      %p529 = scmp.ne.s32.totalorder %s517, %s518
      %p530 = scmp.eq.s32.totalorder %s33, 1
      %p531 = por %p529, %p530
      %p533 = scmp.ne.s32.totalorder %s518, %s532
      %p534 = scmp.eq.s32.totalorder %s33, 0
      %p535 = por %p533, %p534
      %p536 = scmp.le.s32.totalorder 1, %s27
      %p537 = scmp.lt.s32.totalorder %s27, 3
      %p538 = pnand %p536, %p537
      %p539 = pneg %p538
      // Predicated region
      $region9: #{bert_multilabel_forward.1} parent=5 // pred_check
        _
      $region10: #{bert_multilabel_forward.1} parent=5 // pred_check_branch
        %541 = sbr.rel (%p538) target = $region12
      $region11: #{bert_multilabel_forward.1} parent=5 // pred_region
        %s542 = ssub.s32 %s27, 1
        // Predicated region
        $region13: #{bert_multilabel_forward.1} parent=11 // pred_check
          %p543 = pneg %p48
        $region14: #{bert_multilabel_forward.1} parent=11 // pred_check_branch
          %545 = sbr.rel (%p543) target = $region16
        $region15: #{bert_multilabel_forward.1} parent=11 // pred_region
          _
        $region16: #{bert_multilabel_forward.1} parent=11 // pred_fallthru
          _
        // Predicated region
        $region17: #{bert_multilabel_forward.1} parent=11 // pred_check
          %p546 = pneg %p69
        $region18: #{bert_multilabel_forward.1} parent=11 // pred_check_branch
          %548 = sbr.rel (%p546) target = $region20
        $region19: #{bert_multilabel_forward.1} parent=11 // pred_region
          _
        $region20: #{bert_multilabel_forward.1} parent=11 // pred_fallthru
          _
        // Predicated region
        $region21: #{bert_multilabel_forward.1} parent=11 // pred_check
          %p549 = pneg %p90
        $region22: #{bert_multilabel_forward.1} parent=11 // pred_check_branch
          %551 = sbr.rel (%p549) target = $region24
        $region23: #{bert_multilabel_forward.1} parent=11 // pred_region
          _
        $region24: #{bert_multilabel_forward.1} parent=11 // pred_fallthru
          _
        // Predicated region
        $region25: #{bert_multilabel_forward.1} parent=11 // pred_check
          %p552 = pneg %p111
        $region26: #{bert_multilabel_forward.1} parent=11 // pred_check_branch
          %554 = sbr.rel (%p552) target = $region28
        $region27: #{bert_multilabel_forward.1} parent=11 // pred_region
          _
        $region28: #{bert_multilabel_forward.1} parent=11 // pred_fallthru
          _
        // Predicated region
        $region29: #{bert_multilabel_forward.1} parent=11 // pred_check
          %p555 = pneg %p444
        $region30: #{bert_multilabel_forward.1} parent=11 // pred_check_branch
          %557 = sbr.rel (%p555) target = $region32
        $region31: #{bert_multilabel_forward.1} parent=11 // pred_region
          _
        $region32: #{bert_multilabel_forward.1} parent=11 // pred_fallthru
          _
        // Predicated region
        $region33: #{bert_multilabel_forward.1} parent=11 // pred_check
          %p558 = pneg %p465
        $region34: #{bert_multilabel_forward.1} parent=11 // pred_check_branch
          %560 = sbr.rel (%p558) target = $region36
        $region35: #{bert_multilabel_forward.1} parent=11 // pred_region
          _
        $region36: #{bert_multilabel_forward.1} parent=11 // pred_fallthru
          _
        // Predicated region
        $region37: #{bert_multilabel_forward.1} parent=11 // pred_check
          %p561 = pneg %p486
        $region38: #{bert_multilabel_forward.1} parent=11 // pred_check_branch
          %563 = sbr.rel (%p561) target = $region40
        $region39: #{bert_multilabel_forward.1} parent=11 // pred_region
          _
        $region40: #{bert_multilabel_forward.1} parent=11 // pred_fallthru
          _
        // Predicated region
        $region41: #{bert_multilabel_forward.1} parent=11 // pred_check
          %p564 = pneg %p507
        $region42: #{bert_multilabel_forward.1} parent=11 // pred_check_branch
          %566 = sbr.rel (%p564) target = $region44
        $region43: #{bert_multilabel_forward.1} parent=11 // pred_region
          _
        $region44: #{bert_multilabel_forward.1} parent=11 // pred_fallthru
          _
      $region12: #{bert_multilabel_forward.1} parent=5 // pred_fallthru
        _
      %p567 = scmp.lt.s32.totalorder %s27, 2
      // Predicated region
      $region45: #{bert_multilabel_forward.1} parent=5 // pred_check
        %p568 = pneg %p567
      $region46: #{bert_multilabel_forward.1} parent=5 // pred_check_branch
        %570 = sbr.rel (%p568) target = $region48
      $region47: #{bert_multilabel_forward.1} parent=5 // pred_region
        // Predicated region
        $region49: #{bert_multilabel_forward.1} parent=47 // pred_check
          %p571 = pneg %p131
        $region50: #{bert_multilabel_forward.1} parent=47 // pred_check_branch
          %573 = sbr.rel (%p571) target = $region52
        $region51: #{bert_multilabel_forward.1} parent=47 // pred_region
          %p574 = scmp.lt.s32.totalorder %s27, 1
          %s575 = scalar_select %p574, %s27, 1
          %s576 = smul.addr %s575, 4
          %s577 = smul.addr %s576, 4
          %s578 = scalar_lea.vmem %s4, %s577
        $region52: #{bert_multilabel_forward.1} parent=47 // pred_fallthru
          _
        // Predicated region
        $region53: #{bert_multilabel_forward.1} parent=47 // pred_check
          %p579 = pneg %p157
        $region54: #{bert_multilabel_forward.1} parent=47 // pred_check_branch
          %581 = sbr.rel (%p579) target = $region56
        $region55: #{bert_multilabel_forward.1} parent=47 // pred_region
          %p582 = scmp.lt.s32.totalorder %s27, 1
          %s583 = scalar_select %p582, %s27, 1
          %s584 = scalar_lea.vmem %s5, %s583
        $region56: #{bert_multilabel_forward.1} parent=47 // pred_fallthru
          _
        // Predicated region
        $region57: #{bert_multilabel_forward.1} parent=47 // pred_check
          %p585 = pneg %p183
        $region58: #{bert_multilabel_forward.1} parent=47 // pred_check_branch
          %587 = sbr.rel (%p585) target = $region60
        $region59: #{bert_multilabel_forward.1} parent=47 // pred_region
          %p588 = scmp.lt.s32.totalorder %s27, 1
          %s589 = scalar_select %p588, %s27, 1
          %s590 = smul.addr %s589, 4
          %s591 = smul.addr %s590, 4
          %s592 = scalar_lea.vmem %s6, %s591
        $region60: #{bert_multilabel_forward.1} parent=47 // pred_fallthru
          _
        // Predicated region
        $region61: #{bert_multilabel_forward.1} parent=47 // pred_check
          %p593 = pneg %p209
        $region62: #{bert_multilabel_forward.1} parent=47 // pred_check_branch
          %595 = sbr.rel (%p593) target = $region64
        $region63: #{bert_multilabel_forward.1} parent=47 // pred_region
          %p596 = scmp.lt.s32.totalorder %s27, 1
          %s597 = scalar_select %p596, %s27, 1
          %s598 = scalar_lea.vmem %s7, %s597
        $region64: #{bert_multilabel_forward.1} parent=47 // pred_fallthru
          _
        // Predicated region
        $region65: #{bert_multilabel_forward.1} parent=47 // pred_check
          %p599 = pneg %p235
        $region66: #{bert_multilabel_forward.1} parent=47 // pred_check_branch
          %601 = sbr.rel (%p599) target = $region68
        $region67: #{bert_multilabel_forward.1} parent=47 // pred_region
          %p602 = scmp.lt.s32.totalorder %s27, 1
          %s603 = scalar_select %p602, %s27, 1
          %s604 = scalar_lea.vmem %s8, %s603
        $region68: #{bert_multilabel_forward.1} parent=47 // pred_fallthru
          _
        // Predicated region
        $region69: #{bert_multilabel_forward.1} parent=47 // pred_check
          %p605 = pneg %p261
        $region70: #{bert_multilabel_forward.1} parent=47 // pred_check_branch
          %607 = sbr.rel (%p605) target = $region72
        $region71: #{bert_multilabel_forward.1} parent=47 // pred_region
          %p608 = scmp.lt.s32.totalorder %s27, 1
          %s609 = scalar_select %p608, %s27, 1
          %s610 = scalar_lea.vmem %s9, %s609
        $region72: #{bert_multilabel_forward.1} parent=47 // pred_fallthru
          _
        // Predicated region
        $region73: #{bert_multilabel_forward.1} parent=47 // pred_check
          %p611 = pneg %p287
        $region74: #{bert_multilabel_forward.1} parent=47 // pred_check_branch
          %613 = sbr.rel (%p611) target = $region76
        $region75: #{bert_multilabel_forward.1} parent=47 // pred_region
          %p614 = scmp.lt.s32.totalorder %s27, 1
          %s615 = scalar_select %p614, %s27, 1
          %s616 = smul.addr %s615, 4
          %s617 = smul.addr %s616, 4
          %s618 = scalar_lea.vmem %s10, %s617
        $region76: #{bert_multilabel_forward.1} parent=47 // pred_fallthru
          _
        // Predicated region
        $region77: #{bert_multilabel_forward.1} parent=47 // pred_check
          %p619 = pneg %p313
        $region78: #{bert_multilabel_forward.1} parent=47 // pred_check_branch
          %621 = sbr.rel (%p619) target = $region80
        $region79: #{bert_multilabel_forward.1} parent=47 // pred_region
          %p622 = scmp.lt.s32.totalorder %s27, 1
          %s623 = scalar_select %p622, %s27, 1
          %s624 = scalar_lea.vmem %s11, %s623
        $region80: #{bert_multilabel_forward.1} parent=47 // pred_fallthru
          _
        // Predicated region
        $region81: #{bert_multilabel_forward.1} parent=47 // pred_check
          %p625 = pneg %p339
        $region82: #{bert_multilabel_forward.1} parent=47 // pred_check_branch
          %627 = sbr.rel (%p625) target = $region84
        $region83: #{bert_multilabel_forward.1} parent=47 // pred_region
          %p628 = scmp.lt.s32.totalorder %s27, 1
          %s629 = scalar_select %p628, %s27, 1
          %s630 = smul.addr %s629, 8
          %s631 = smul.addr %s630, 4
          %s632 = scalar_lea.vmem %s12, %s631
        $region84: #{bert_multilabel_forward.1} parent=47 // pred_fallthru
          _
        // Predicated region
        $region85: #{bert_multilabel_forward.1} parent=47 // pred_check
          %p633 = pneg %p365
        $region86: #{bert_multilabel_forward.1} parent=47 // pred_check_branch
          %635 = sbr.rel (%p633) target = $region88
        $region87: #{bert_multilabel_forward.1} parent=47 // pred_region
          %p636 = scmp.lt.s32.totalorder %s27, 1
          %s637 = scalar_select %p636, %s27, 1
          %s638 = scalar_lea.vmem %s13, %s637
        $region88: #{bert_multilabel_forward.1} parent=47 // pred_fallthru
          _
        // Predicated region
        $region89: #{bert_multilabel_forward.1} parent=47 // pred_check
          %p639 = pneg %p391
        $region90: #{bert_multilabel_forward.1} parent=47 // pred_check_branch
          %641 = sbr.rel (%p639) target = $region92
        $region91: #{bert_multilabel_forward.1} parent=47 // pred_region
          %p642 = scmp.lt.s32.totalorder %s27, 1
          %s643 = scalar_select %p642, %s27, 1
          %s644 = scalar_lea.vmem %s14, %s643
        $region92: #{bert_multilabel_forward.1} parent=47 // pred_fallthru
          _
        // Predicated region
        $region93: #{bert_multilabel_forward.1} parent=47 // pred_check
          %p645 = pneg %p417
        $region94: #{bert_multilabel_forward.1} parent=47 // pred_check_branch
          %647 = sbr.rel (%p645) target = $region96
        $region95: #{bert_multilabel_forward.1} parent=47 // pred_region
          %p648 = scmp.lt.s32.totalorder %s27, 1
          %s649 = scalar_select %p648, %s27, 1
          %s650 = scalar_lea.vmem %s15, %s649
        $region96: #{bert_multilabel_forward.1} parent=47 // pred_fallthru
          _
      $region48: #{bert_multilabel_forward.1} parent=5 // pred_fallthru
        _
      %p651 = scmp.le.s32.totalorder 1, %s27
      %p652 = scmp.lt.s32.totalorder %s27, 3
      %p653 = pnand %p651, %p652
      %p654 = pneg %p653
      // Predicated region
      $region97: #{bert_multilabel_forward.1} parent=5 // pred_check
        _
      $region98: #{bert_multilabel_forward.1} parent=5 // pred_check_branch
        %656 = sbr.rel (%p653) target = $region100
      $region99: #{bert_multilabel_forward.1} parent=5 // pred_region
        %s657 = ssub.s32 %s27, 1
        %p658 = pneg %p48
        %p659 = pneg %p45
        %p660 = pneg %p69
        %p661 = pneg %p66
        %p662 = pneg %p90
        %p663 = pneg %p87
        %p664 = pneg %p111
        %p665 = pneg %p108
        %p666 = scmp.lt.s32.totalorder %s32, 1
        %s667 = scalar_select %p666, %s32, 1
        %s668 = smul.addr %s667, 4
        %s669 = smul.addr %s668, 4
        %s670 = scalar_lea.vmem %s4, %s669
        %p671 = pneg %p137
        %p672 = pneg %p134
        %p673 = scmp.lt.s32.totalorder %s32, 1
        %s674 = scalar_select %p673, %s32, 1
        %s675 = scalar_lea.vmem %s5, %s674
        %p676 = pneg %p163
        %p677 = pneg %p160
        %p678 = scmp.lt.s32.totalorder %s32, 1
        %s679 = scalar_select %p678, %s32, 1
        %s680 = smul.addr %s679, 4
        %s681 = smul.addr %s680, 4
        %s682 = scalar_lea.vmem %s6, %s681
        %p683 = pneg %p189
        %p684 = pneg %p186
        %p685 = scmp.lt.s32.totalorder %s32, 1
        %s686 = scalar_select %p685, %s32, 1
        %s687 = scalar_lea.vmem %s7, %s686
        %p688 = pneg %p215
        %p689 = pneg %p212
        %p690 = scmp.lt.s32.totalorder %s32, 1
        %s691 = scalar_select %p690, %s32, 1
        %s692 = scalar_lea.vmem %s8, %s691
        %p693 = pneg %p241
        %p694 = pneg %p238
        %p695 = scmp.lt.s32.totalorder %s32, 1
        %s696 = scalar_select %p695, %s32, 1
        %s697 = scalar_lea.vmem %s9, %s696
        %p698 = pneg %p267
        %p699 = pneg %p264
        %p700 = scmp.lt.s32.totalorder %s32, 1
        %s701 = scalar_select %p700, %s32, 1
        %s702 = smul.addr %s701, 4
        %s703 = smul.addr %s702, 4
        %s704 = scalar_lea.vmem %s10, %s703
        %p705 = pneg %p293
        %p706 = pneg %p290
        %p707 = scmp.lt.s32.totalorder %s32, 1
        %s708 = scalar_select %p707, %s32, 1
        %s709 = scalar_lea.vmem %s11, %s708
        %p710 = pneg %p319
        %p711 = pneg %p316
        %p712 = scmp.lt.s32.totalorder %s32, 1
        %s713 = scalar_select %p712, %s32, 1
        %s714 = smul.addr %s713, 8
        %s715 = smul.addr %s714, 4
        %s716 = scalar_lea.vmem %s12, %s715
        %p717 = pneg %p345
        %p718 = pneg %p342
        %p719 = scmp.lt.s32.totalorder %s32, 1
        %s720 = scalar_select %p719, %s32, 1
        %s721 = scalar_lea.vmem %s13, %s720
        %p722 = pneg %p371
        %p723 = pneg %p368
        %p724 = scmp.lt.s32.totalorder %s32, 1
        %s725 = scalar_select %p724, %s32, 1
        %s726 = scalar_lea.vmem %s14, %s725
        %p727 = pneg %p397
        %p728 = pneg %p394
        %p729 = scmp.lt.s32.totalorder %s32, 1
        %s730 = scalar_select %p729, %s32, 1
        %s731 = scalar_lea.vmem %s15, %s730
        %p732 = pneg %p423
        %p733 = pneg %p420
        %p734 = pneg %p444
        %p735 = pneg %p441
        %p736 = pneg %p465
        %p737 = pneg %p462
        %p738 = pneg %p486
        %p739 = pneg %p483
        %p740 = pneg %p507
        %p741 = pneg %p504
        %p742 = pneg %p528
        %p743 = pneg %p525
        %p744 = scmp.lt.s32.totalorder %s32, 1
        %s745 = scalar_select %p744, %s32, 1
        %s746 = smul.addr %s745, 4
        %s747 = smul.addr %s746, 4
        %s748 = scalar_lea.vmem %s4, %s747
        %p749 = scmp.lt.s32.totalorder %s32, 1
        %s750 = scalar_select %p749, %s32, 1
        %s751 = scalar_lea.vmem %s5, %s750
        %p752 = scmp.lt.s32.totalorder %s32, 1
        %s753 = scalar_select %p752, %s32, 1
        %s754 = smul.addr %s753, 4
        %s755 = smul.addr %s754, 4
        %s756 = scalar_lea.vmem %s6, %s755
        %p757 = scmp.lt.s32.totalorder %s32, 1
        %s758 = scalar_select %p757, %s32, 1
        %s759 = scalar_lea.vmem %s7, %s758
        %p760 = scmp.lt.s32.totalorder %s32, 1
        %s761 = scalar_select %p760, %s32, 1
        %s762 = scalar_lea.vmem %s8, %s761
        %p763 = scmp.lt.s32.totalorder %s32, 1
        %s764 = scalar_select %p763, %s32, 1
        %s765 = scalar_lea.vmem %s9, %s764
        %p766 = scmp.lt.s32.totalorder %s32, 1
        %s767 = scalar_select %p766, %s32, 1
        %s768 = smul.addr %s767, 4
        %s769 = smul.addr %s768, 4
        %s770 = scalar_lea.vmem %s10, %s769
        %p771 = scmp.lt.s32.totalorder %s32, 1
        %s772 = scalar_select %p771, %s32, 1
        %s773 = scalar_lea.vmem %s11, %s772
        %p774 = scmp.lt.s32.totalorder %s32, 1
        %s775 = scalar_select %p774, %s32, 1
        %s776 = smul.addr %s775, 8
        %s777 = smul.addr %s776, 4
        %s778 = scalar_lea.vmem %s12, %s777
        %p779 = scmp.lt.s32.totalorder %s32, 1
        %s780 = scalar_select %p779, %s32, 1
        %s781 = scalar_lea.vmem %s13, %s780
        %p782 = scmp.lt.s32.totalorder %s32, 1
        %s783 = scalar_select %p782, %s32, 1
        %s784 = scalar_lea.vmem %s14, %s783
        %p785 = scmp.lt.s32.totalorder %s32, 1
        %s786 = scalar_select %p785, %s32, 1
        %s787 = scalar_lea.vmem %s15, %s786
        %p789 = scmp.eq.s32.totalorder %s32, 0
        // Predicated region
        $region101: #{bert_multilabel_forward.1} parent=99 // pred_check
          %p790 = pneg %p789
        $region102: #{bert_multilabel_forward.1} parent=99 // pred_check_branch
          %792 = sbr.rel (%p790) target = $region104
        $region103: #{bert_multilabel_forward.1} parent=99 // pred_region
          %v793 = vld [vmem:[%s0] sm:$0xff]
          %v794 = vld [vmem:[%s0 + $0x8] sm:$0xff]
          %v795 = vld [vmem:[%s2] sm:$0x1]
          %v796 = vld [vmem:[%s3] sm:$0x1]
          %vm797 = vcmask 261120
          %v798 = vsel %vm797, %v793, 0.0
          %799 = vadd.xlane.f32.xlu0 %v798
          %v800 = vpop.xlane.xlu0 %799
          %v801 = vsel %vm797, %v794, 0.0
          %802 = vadd.xlane.f32.xlu0 %v801
          %v803 = vpop.xlane.xlu0 %802
          %v804 = vrcp.pop 32.0
          %v805 = vmul.f32 %v800, %v804
          %v806 = vmul.f32 %v803, %v804
          %v807 = vsub.f32 %v793, %v805
          %v808 = vsub.f32 %v794, %v806
          %v809 = vmul.f32 %v807, %v807
          %v810 = vmul.f32 %v808, %v808
          %v811 = vsel %vm797, %v809, 0.0
          %812 = vadd.xlane.f32.xlu0 %v811
          %v813 = vpop.xlane.xlu0 %812
          %v814 = vsel %vm797, %v810, 0.0
          %815 = vadd.xlane.f32.xlu0 %v814
          %v816 = vpop.xlane.xlu0 %815
          %v817 = vmul.f32 %v813, %v804
          %v818 = vmul.f32 %v816, %v804
          %v819 = vadd.f32 %v817, 1e-12
          %v820 = vadd.f32 %v818, 1e-12
          %v821 = vrsqrt.pop %v819
          %v822 = vrsqrt.pop %v820
          %v823 = vmul.f32 %v807, %v821
          %v824 = vmul.f32 %v808, %v822
          %v826 = vlaneseq
          %v827 = vshrl.u32 %v826, 7
          %v828 = vsub.s32 0, %v827
          %v829 = vrot.slane %v795, %v828
          %v831 = vmul.f32 %v823, %v829
          %v832 = vmul.f32 %v824, %v829
          %v834 = vlaneseq
          %v835 = vshrl.u32 %v834, 7
          %v836 = vsub.s32 0, %v835
          %v837 = vrot.slane %v796, %v836
          %v839 = vadd.f32 %v831, %v837
          %v840 = vadd.f32 %v832, %v837
          %841 = vst.msk [vmem:[#allocation2] sm:$0xff] %vm797, %v839
          %842 = vst.msk [vmem:[#allocation2 + $0x8] sm:$0xff] %vm797, %v840
        $region104: #{bert_multilabel_forward.1} parent=99 // pred_fallthru
          _
        %v843 = vld [vmem:[#allocation2] sm:$0xff]
        %v844 = vld [vmem:[#allocation2 + $0x8] sm:$0xff]
        %v845 = vpack.c.bf16 %v844, %v843
        %v846 = vld [vmem:[%s748] sm:$0xf]
        %v847 = vld [vmem:[%s748 + $0x4] sm:$0xf]
        %v848 = vld [vmem:[%s748 + $0x8] sm:$0xf]
        %v849 = vld [vmem:[%s748 + $0xc] sm:$0xf]
        %v850 = vld [vmem:[%s751] sm:$0x1]
        %v852 = vlaneseq
        %v853 = vshrl.u32 %v852, 7
        %v854 = vsub.s32 0, %v853
        %v855 = vrot.slane %v850, %v854
        %v861 = vunpack.c.l.b16 %v846
        %v862 = vunpack.c.l.b16 %v847
        %v863 = vunpack.c.l.b16 %v848
        %v864 = vunpack.c.l.b16 %v849
        %v865 = vpack.c.b16 %v862, %v861
        %v866 = vpack.c.b16 %v864, %v863
        %vm869 = vcmask 261120
        %v871 = vsel %vm869, %v845, 0
        %873 = vmatprep.subr.bf16.mxu0 0
        %874 = vmatpush1.bf16.msra.mxu0 0
        %875 = vmatprep.subr.bf16.mxu0 0
        %876 = vmatpush1.bf16.msra.mxu0 0
        %877 = vmatprep.subr.bf16.mxu0 0
        %878 = vmatpush1.bf16.msra.mxu0 0
        %879 = vmatprep.subr.bf16.mxu0 0
        %880 = vmatpush1.bf16.msra.mxu0 0
        %881 = vmatprep.subr.bf16.mxu0 0
        %882 = vmatpush1.bf16.msra.mxu0 0
        %883 = vmatprep.subr.bf16.mxu0 0
        %884 = vmatpush1.bf16.msra.mxu0 0
        %885 = vmatprep.subr.bf16.mxu0 0
        %886 = vmatpush1.bf16.msra.mxu0 %v866
        %887 = vmatprep.subr.bf16.mxu0 0
        %888 = vmatpush1.bf16.msra.mxu0 %v865
        %889 = vmatprep.subr.bf16.mxu0 0
        %890 = vmatpush2.bf16.msra.mxu0 0
        %891 = vmatprep.subr.bf16.mxu0 0
        %892 = vmatpush2.bf16.msra.mxu0 0
        %893 = vmatprep.subr.bf16.mxu0 0
        %894 = vmatpush2.bf16.msra.mxu0 0
        %895 = vmatprep.subr.bf16.mxu0 0
        %896 = vmatpush2.bf16.msra.mxu0 0
        %897 = vmatprep.subr.bf16.mxu0 0
        %898 = vmatpush2.bf16.msra.mxu0 0
        %899 = vmatprep.subr.bf16.mxu0 0
        %900 = vmatpush2.bf16.msra.mxu0 0
        %901 = vmatprep.subr.bf16.mxu0 0
        %902 = vmatpush2.bf16.msra.mxu0 0
        %903 = vmatprep.subr.bf16.mxu0 0
        %904 = vmatpush2.bf16.msra.mxu0 0
        %905 = vmatprep.mubr.bf16.mxu0 0
        %906 = vmatmul.mubr.bf16.gmra.mxu0 %v871
        %v907 = vpop.f32.mrf.mxu0
        %v908 = vadd.f32 %v855, %v907
        %v909 = vpop.f32.mrf.mxu0
        %v910 = vpop.f32.mrf.mxu0
        %v911 = vadd.f32 %v855, %v910
        %v912 = vpop.f32.mrf.mxu0
        %913 = vdwg.mxu0
        %v914 = vpack.c.bf16 %v911, %v908
        %v915 = vld [vmem:[%s1] sm:$0x3]
        %v918 = vunpack.c.l.s4 1966171168
        %v919 = vunpack.c.0.s8 %v918
        %v920 = vlaneseq
        %v921 = vshrl.u32 %v920, 7
        %v922 = vsub.s32 %v919, %v921
        %v923 = vrot.slane %v915, %v922
        %v924 = vcombine.high %v923, %v923
        %v926 = vunpack.c.l.s4 1966171168
        %v927 = vunpack.c.0.s8 %v926
        %v928 = vlaneseq
        %v929 = vshrl.u32 %v928, 7
        %v930 = vsub.s32 %v927, %v929
        %v931 = vrot.slane %v923, %v930
        %v933 = vunpack.c.l.s4 1966171168
        %v934 = vunpack.c.0.s8 %v933
        %v935 = vlaneseq
        %v936 = vshrl.u32 %v935, 7
        %v937 = vsub.s32 %v934, %v936
        %v938 = vrot.slane %v924, %v937
        %v940 = vunpack.c.l.b16 %v914
        %v941 = vunpack.c.h.b16 %v914
        %v942 = vpack.c.b16 %v940, %v940
        %v943 = vpack.c.b16 %v941, %v941
        %v944 = vlaneseq
        %v945 = vshrl.u32 %v944, 7
        %v946 = vsub.s32 0, %v945
        %v947 = vrot.slane %v931, %v946
        %v948 = vlaneseq
        %v949 = vshrl.u32 %v948, 7
        %v950 = vsub.s32 0, %v949
        %v951 = vrot.slane %v938, %v950
        %954 = vrot.lane.b32.xlu0 %v942, 96
        %v955 = vpop.permute.xlu0 %954
        %vm956 = vcmask 130048
        %v958 = vsel %vm956, %v942, 0
        %v961 = vsel %vm956, %v955, 0
        %963 = vmatprep.subr.bf16.mxu0 0
        %964 = vmatpush1.bf16.xpose.msra.mxu0 0
        %965 = vmatprep.subr.bf16.mxu0 0
        %966 = vmatpush1.bf16.xpose.msra.mxu0 0
        %967 = vmatprep.subr.bf16.mxu0 0
        %968 = vmatpush1.bf16.xpose.msra.mxu0 0
        %969 = vmatprep.subr.bf16.mxu0 0
        %970 = vmatpush1.bf16.xpose.msra.mxu0 0
        %971 = vmatprep.subr.bf16.mxu0 0
        %972 = vmatpush1.bf16.xpose.msra.mxu0 0
        %973 = vmatprep.subr.bf16.mxu0 0
        %974 = vmatpush1.bf16.xpose.msra.mxu0 0
        %975 = vmatprep.subr.bf16.mxu0 0
        %976 = vmatpush1.bf16.xpose.msra.mxu0 0
        %977 = vmatprep.subr.bf16.mxu0 0
        %978 = vmatpush1.bf16.xpose.msra.mxu0 %v961
        %979 = vmatprep.subr.bf16.mxu0 0
        %980 = vmatpush2.bf16.xpose.msra.mxu0 0
        %981 = vmatprep.subr.bf16.mxu0 0
        %982 = vmatpush2.bf16.xpose.msra.mxu0 0
        %983 = vmatprep.subr.bf16.mxu0 0
        %984 = vmatpush2.bf16.xpose.msra.mxu0 0
        %985 = vmatprep.subr.bf16.mxu0 0
        %986 = vmatpush2.bf16.xpose.msra.mxu0 0
        %987 = vmatprep.subr.bf16.mxu0 0
        %988 = vmatpush2.bf16.xpose.msra.mxu0 0
        %989 = vmatprep.subr.bf16.mxu0 0
        %990 = vmatpush2.bf16.xpose.msra.mxu0 0
        %991 = vmatprep.subr.bf16.mxu0 0
        %992 = vmatpush2.bf16.xpose.msra.mxu0 0
        %993 = vmatprep.subr.bf16.mxu0 0
        %994 = vmatpush2.bf16.xpose.msra.mxu0 0
        %995 = vmatprep.mubr.bf16.mxu0 0
        %996 = vmatmul.mubr.bf16.gmra.mxu0 %v958
        %v997 = vpop.f32.mrf.mxu0
        %v998 = vadd.f32 %v947, %v997
        %v999 = vpop.f32.mrf.mxu0
        %v1000 = vpop.f32.mrf.mxu0
        %v1001 = vpop.f32.mrf.mxu0
        %1002 = vdwg.mxu0
        %1003 = vrot.lane.b32.xlu0 %v943, 96
        %v1004 = vpop.permute.xlu0 %1003
        %v1006 = vsel %vm956, %v943, 0
        %v1009 = vsel %vm956, %v1004, 0
        %1011 = vmatprep.subr.bf16.mxu0 0
        %1012 = vmatpush1.bf16.xpose.msra.mxu0 0
        %1013 = vmatprep.subr.bf16.mxu0 0
        %1014 = vmatpush1.bf16.xpose.msra.mxu0 0
        %1015 = vmatprep.subr.bf16.mxu0 0
        %1016 = vmatpush1.bf16.xpose.msra.mxu0 0
        %1017 = vmatprep.subr.bf16.mxu0 0
        %1018 = vmatpush1.bf16.xpose.msra.mxu0 0
        %1019 = vmatprep.subr.bf16.mxu0 0
        %1020 = vmatpush1.bf16.xpose.msra.mxu0 0
        %1021 = vmatprep.subr.bf16.mxu0 0
        %1022 = vmatpush1.bf16.xpose.msra.mxu0 0
        %1023 = vmatprep.subr.bf16.mxu0 0
        %1024 = vmatpush1.bf16.xpose.msra.mxu0 0
        %1025 = vmatprep.subr.bf16.mxu0 0
        %1026 = vmatpush1.bf16.xpose.msra.mxu0 %v1009
        %1027 = vmatprep.subr.bf16.mxu0 0
        %1028 = vmatpush2.bf16.xpose.msra.mxu0 0
        %1029 = vmatprep.subr.bf16.mxu0 0
        %1030 = vmatpush2.bf16.xpose.msra.mxu0 0
        %1031 = vmatprep.subr.bf16.mxu0 0
        %1032 = vmatpush2.bf16.xpose.msra.mxu0 0
        %1033 = vmatprep.subr.bf16.mxu0 0
        %1034 = vmatpush2.bf16.xpose.msra.mxu0 0
        %1035 = vmatprep.subr.bf16.mxu0 0
        %1036 = vmatpush2.bf16.xpose.msra.mxu0 0
        %1037 = vmatprep.subr.bf16.mxu0 0
        %1038 = vmatpush2.bf16.xpose.msra.mxu0 0
        %1039 = vmatprep.subr.bf16.mxu0 0
        %1040 = vmatpush2.bf16.xpose.msra.mxu0 0
        %1041 = vmatprep.subr.bf16.mxu0 0
        %1042 = vmatpush2.bf16.xpose.msra.mxu0 0
        %1043 = vmatprep.mubr.bf16.mxu0 0
        %1044 = vmatmul.mubr.bf16.gmra.mxu0 %v1006
        %v1045 = vpop.f32.mrf.mxu0
        %v1046 = vadd.f32 %v951, %v1045
        %v1047 = vpop.f32.mrf.mxu0
        %v1048 = vpop.f32.mrf.mxu0
        %v1049 = vpop.f32.mrf.mxu0
        %1050 = vdwg.mxu0
        %vm1051 = vcmask 64512
        %v1052 = vsel %vm1051, %v998, -inf
        %1053 = vmax.xlane.f32.xlu0 %v1052
        %v1054 = vpop.xlane.xlu0 %1053
        %v1055 = vsel %vm1051, %v1046, -inf
        %1056 = vmax.xlane.f32.xlu0 %v1055
        %v1057 = vpop.xlane.xlu0 %1056
        %v1058 = vsub.f32 %v998, %v1054
        %v1059 = vsub.f32 %v1046, %v1057
        %v1060 = vmul.f32 %v1058, 1.442695
        %v1061 = vpow.pop %v1060
        %v1062 = vmul.f32 %v1059, 1.442695
        %v1063 = vpow.pop %v1062
        %v1064 = vsel %vm1051, %v1061, 0.0
        %1065 = vadd.xlane.f32.xlu0 %v1064
        %v1066 = vpop.xlane.xlu0 %1065
        %v1067 = vsel %vm1051, %v1063, 0.0
        %1068 = vadd.xlane.f32.xlu0 %v1067
        %v1069 = vpop.xlane.xlu0 %1068
        %v1070 = vrcp.pop %v1066
        %v1071 = vrcp.pop %v1069
        %v1072 = vmul.f32 %v1061, %v1070
        %v1073 = vmul.f32 %v1063, %v1071
        %v1074 = vpack.c.bf16 %v1072, %v1072
        %v1075 = vpack.c.bf16 %v1073, %v1073
        %1076 = vrot.lane.b32.xlu0 %v942, 64
        %v1077 = vpop.permute.xlu0 %1076
        %v1079 = vsel %vm1051, %v1074, 0
        %vm1081 = vcmask 1043456
        %v1083 = vsel %vm1081, %v1077, 0
        %1085 = vmatprep.subr.bf16.mxu0 0
        %1086 = vmatpush1.bf16.msra.mxu0 0
        %1087 = vmatprep.subr.bf16.mxu0 0
        %1088 = vmatpush1.bf16.msra.mxu0 0
        %1089 = vmatprep.subr.bf16.mxu0 0
        %1090 = vmatpush1.bf16.msra.mxu0 0
        %1091 = vmatprep.subr.bf16.mxu0 0
        %1092 = vmatpush1.bf16.msra.mxu0 0
        %1093 = vmatprep.subr.bf16.mxu0 0
        %1094 = vmatpush1.bf16.msra.mxu0 0
        %1095 = vmatprep.subr.bf16.mxu0 0
        %1096 = vmatpush1.bf16.msra.mxu0 0
        %1097 = vmatprep.subr.bf16.mxu0 0
        %1098 = vmatpush1.bf16.msra.mxu0 0
        %1099 = vmatprep.subr.bf16.mxu0 0
        %1100 = vmatpush1.bf16.msra.mxu0 %v1083
        %1101 = vmatprep.subr.bf16.mxu0 0
        %1102 = vmatpush2.bf16.msra.mxu0 0
        %1103 = vmatprep.subr.bf16.mxu0 0
        %1104 = vmatpush2.bf16.msra.mxu0 0
        %1105 = vmatprep.subr.bf16.mxu0 0
        %1106 = vmatpush2.bf16.msra.mxu0 0
        %1107 = vmatprep.subr.bf16.mxu0 0
        %1108 = vmatpush2.bf16.msra.mxu0 0
        %1109 = vmatprep.subr.bf16.mxu0 0
        %1110 = vmatpush2.bf16.msra.mxu0 0
        %1111 = vmatprep.subr.bf16.mxu0 0
        %1112 = vmatpush2.bf16.msra.mxu0 0
        %1113 = vmatprep.subr.bf16.mxu0 0
        %1114 = vmatpush2.bf16.msra.mxu0 0
        %1115 = vmatprep.subr.bf16.mxu0 0
        %1116 = vmatpush2.bf16.msra.mxu0 0
        %1117 = vmatprep.mubr.bf16.mxu0 0
        %1118 = vmatmul.mubr.bf16.gmra.mxu0 %v1079
        %v1119 = vpop.f32.mrf.mxu0
        %v1120 = vadd.f32 0.0, %v1119
        %v1121 = vpop.f32.mrf.mxu0
        %v1122 = vpop.f32.mrf.mxu0
        %v1123 = vpop.f32.mrf.mxu0
        %1124 = vdwg.mxu0
        %1125 = vrot.lane.b32.xlu0 %v943, 64
        %v1126 = vpop.permute.xlu0 %1125
        %v1128 = vsel %vm1051, %v1075, 0
        %v1131 = vsel %vm1081, %v1126, 0
        %1133 = vmatprep.subr.bf16.mxu0 0
        %1134 = vmatpush1.bf16.msra.mxu0 0
        %1135 = vmatprep.subr.bf16.mxu0 0
        %1136 = vmatpush1.bf16.msra.mxu0 0
        %1137 = vmatprep.subr.bf16.mxu0 0
        %1138 = vmatpush1.bf16.msra.mxu0 0
        %1139 = vmatprep.subr.bf16.mxu0 0
        %1140 = vmatpush1.bf16.msra.mxu0 0
        %1141 = vmatprep.subr.bf16.mxu0 0
        %1142 = vmatpush1.bf16.msra.mxu0 0
        %1143 = vmatprep.subr.bf16.mxu0 0
        %1144 = vmatpush1.bf16.msra.mxu0 0
        %1145 = vmatprep.subr.bf16.mxu0 0
        %1146 = vmatpush1.bf16.msra.mxu0 0
        %1147 = vmatprep.subr.bf16.mxu0 0
        %1148 = vmatpush1.bf16.msra.mxu0 %v1131
        %1149 = vmatprep.subr.bf16.mxu0 0
        %1150 = vmatpush2.bf16.msra.mxu0 0
        %1151 = vmatprep.subr.bf16.mxu0 0
        %1152 = vmatpush2.bf16.msra.mxu0 0
        %1153 = vmatprep.subr.bf16.mxu0 0
        %1154 = vmatpush2.bf16.msra.mxu0 0
        %1155 = vmatprep.subr.bf16.mxu0 0
        %1156 = vmatpush2.bf16.msra.mxu0 0
        %1157 = vmatprep.subr.bf16.mxu0 0
        %1158 = vmatpush2.bf16.msra.mxu0 0
        %1159 = vmatprep.subr.bf16.mxu0 0
        %1160 = vmatpush2.bf16.msra.mxu0 0
        %1161 = vmatprep.subr.bf16.mxu0 0
        %1162 = vmatpush2.bf16.msra.mxu0 0
        %1163 = vmatprep.subr.bf16.mxu0 0
        %1164 = vmatpush2.bf16.msra.mxu0 0
        %1165 = vmatprep.mubr.bf16.mxu0 0
        %1166 = vmatmul.mubr.bf16.gmra.mxu0 %v1128
        %v1167 = vpop.f32.mrf.mxu0
        %v1168 = vadd.f32 0.0, %v1167
        %v1169 = vpop.f32.mrf.mxu0
        %v1170 = vpop.f32.mrf.mxu0
        %v1171 = vpop.f32.mrf.mxu0
        %1172 = vdwg.mxu0
        %1173 = vrot.lane.b32.xlu0 %v942, 112
        %v1174 = vpop.permute.xlu0 %1173
        %1175 = vrot.lane.b32.xlu0 %v942, 80
        %v1176 = vpop.permute.xlu0 %1175
        %v1178 = vsel %vm956, %v1174, 0
        %v1181 = vsel %vm956, %v1176, 0
        %1183 = vmatprep.subr.bf16.mxu0 0
        %1184 = vmatpush1.bf16.xpose.msra.mxu0 0
        %1185 = vmatprep.subr.bf16.mxu0 0
        %1186 = vmatpush1.bf16.xpose.msra.mxu0 0
        %1187 = vmatprep.subr.bf16.mxu0 0
        %1188 = vmatpush1.bf16.xpose.msra.mxu0 0
        %1189 = vmatprep.subr.bf16.mxu0 0
        %1190 = vmatpush1.bf16.xpose.msra.mxu0 0
        %1191 = vmatprep.subr.bf16.mxu0 0
        %1192 = vmatpush1.bf16.xpose.msra.mxu0 0
        %1193 = vmatprep.subr.bf16.mxu0 0
        %1194 = vmatpush1.bf16.xpose.msra.mxu0 0
        %1195 = vmatprep.subr.bf16.mxu0 0
        %1196 = vmatpush1.bf16.xpose.msra.mxu0 0
        %1197 = vmatprep.subr.bf16.mxu0 0
        %1198 = vmatpush1.bf16.xpose.msra.mxu0 %v1181
        %1199 = vmatprep.subr.bf16.mxu0 0
        %1200 = vmatpush2.bf16.xpose.msra.mxu0 0
        %1201 = vmatprep.subr.bf16.mxu0 0
        %1202 = vmatpush2.bf16.xpose.msra.mxu0 0
        %1203 = vmatprep.subr.bf16.mxu0 0
        %1204 = vmatpush2.bf16.xpose.msra.mxu0 0
        %1205 = vmatprep.subr.bf16.mxu0 0
        %1206 = vmatpush2.bf16.xpose.msra.mxu0 0
        %1207 = vmatprep.subr.bf16.mxu0 0
        %1208 = vmatpush2.bf16.xpose.msra.mxu0 0
        %1209 = vmatprep.subr.bf16.mxu0 0
        %1210 = vmatpush2.bf16.xpose.msra.mxu0 0
        %1211 = vmatprep.subr.bf16.mxu0 0
        %1212 = vmatpush2.bf16.xpose.msra.mxu0 0
        %1213 = vmatprep.subr.bf16.mxu0 0
        %1214 = vmatpush2.bf16.xpose.msra.mxu0 0
        %1215 = vmatprep.mubr.bf16.mxu0 0
        %1216 = vmatmul.mubr.bf16.gmra.mxu0 %v1178
        %v1217 = vpop.f32.mrf.mxu0
        %v1218 = vadd.f32 %v947, %v1217
        %v1219 = vpop.f32.mrf.mxu0
        %v1220 = vpop.f32.mrf.mxu0
        %v1221 = vpop.f32.mrf.mxu0
        %1222 = vdwg.mxu0
        %1223 = vrot.lane.b32.xlu0 %v943, 112
        %v1224 = vpop.permute.xlu0 %1223
        %1225 = vrot.lane.b32.xlu0 %v943, 80
        %v1226 = vpop.permute.xlu0 %1225
        %v1228 = vsel %vm956, %v1224, 0
        %v1231 = vsel %vm956, %v1226, 0
        %1233 = vmatprep.subr.bf16.mxu0 0
        %1234 = vmatpush1.bf16.xpose.msra.mxu0 0
        %1235 = vmatprep.subr.bf16.mxu0 0
        %1236 = vmatpush1.bf16.xpose.msra.mxu0 0
        %1237 = vmatprep.subr.bf16.mxu0 0
        %1238 = vmatpush1.bf16.xpose.msra.mxu0 0
        %1239 = vmatprep.subr.bf16.mxu0 0
        %1240 = vmatpush1.bf16.xpose.msra.mxu0 0
        %1241 = vmatprep.subr.bf16.mxu0 0
        %1242 = vmatpush1.bf16.xpose.msra.mxu0 0
        %1243 = vmatprep.subr.bf16.mxu0 0
        %1244 = vmatpush1.bf16.xpose.msra.mxu0 0
        %1245 = vmatprep.subr.bf16.mxu0 0
        %1246 = vmatpush1.bf16.xpose.msra.mxu0 0
        %1247 = vmatprep.subr.bf16.mxu0 0
        %1248 = vmatpush1.bf16.xpose.msra.mxu0 %v1231
        %1249 = vmatprep.subr.bf16.mxu0 0
        %1250 = vmatpush2.bf16.xpose.msra.mxu0 0
        %1251 = vmatprep.subr.bf16.mxu0 0
        %1252 = vmatpush2.bf16.xpose.msra.mxu0 0
        %1253 = vmatprep.subr.bf16.mxu0 0
        %1254 = vmatpush2.bf16.xpose.msra.mxu0 0
        %1255 = vmatprep.subr.bf16.mxu0 0
        %1256 = vmatpush2.bf16.xpose.msra.mxu0 0
        %1257 = vmatprep.subr.bf16.mxu0 0
        %1258 = vmatpush2.bf16.xpose.msra.mxu0 0
        %1259 = vmatprep.subr.bf16.mxu0 0
        %1260 = vmatpush2.bf16.xpose.msra.mxu0 0
        %1261 = vmatprep.subr.bf16.mxu0 0
        %1262 = vmatpush2.bf16.xpose.msra.mxu0 0
        %1263 = vmatprep.subr.bf16.mxu0 0
        %1264 = vmatpush2.bf16.xpose.msra.mxu0 0
        %1265 = vmatprep.mubr.bf16.mxu0 0
        %1266 = vmatmul.mubr.bf16.gmra.mxu0 %v1228
        %v1267 = vpop.f32.mrf.mxu0
        %v1268 = vadd.f32 %v951, %v1267
        %v1269 = vpop.f32.mrf.mxu0
        %v1270 = vpop.f32.mrf.mxu0
        %v1271 = vpop.f32.mrf.mxu0
        %1272 = vdwg.mxu0
        %v1273 = vsel %vm1051, %v1218, -inf
        %1274 = vmax.xlane.f32.xlu0 %v1273
        %v1275 = vpop.xlane.xlu0 %1274
        %v1276 = vsel %vm1051, %v1268, -inf
        %1277 = vmax.xlane.f32.xlu0 %v1276
        %v1278 = vpop.xlane.xlu0 %1277
        %v1279 = vsub.f32 %v1218, %v1275
        %v1280 = vsub.f32 %v1268, %v1278
        %v1281 = vmul.f32 %v1279, 1.442695
        %v1282 = vpow.pop %v1281
        %v1283 = vmul.f32 %v1280, 1.442695
        %v1284 = vpow.pop %v1283
        %v1285 = vsel %vm1051, %v1282, 0.0
        %1286 = vadd.xlane.f32.xlu0 %v1285
        %v1287 = vpop.xlane.xlu0 %1286
        %v1288 = vsel %vm1051, %v1284, 0.0
        %1289 = vadd.xlane.f32.xlu0 %v1288
        %v1290 = vpop.xlane.xlu0 %1289
        %v1291 = vrcp.pop %v1287
        %v1292 = vrcp.pop %v1290
        %v1293 = vmul.f32 %v1282, %v1291
        %v1294 = vmul.f32 %v1284, %v1292
        %v1295 = vpack.c.bf16 %v1293, %v1293
        %v1296 = vpack.c.bf16 %v1294, %v1294
        %1297 = vrot.lane.b32.xlu0 %v942, 48
        %v1298 = vpop.permute.xlu0 %1297
        %v1300 = vsel %vm1051, %v1295, 0
        %v1303 = vsel %vm1081, %v1298, 0
        %1305 = vmatprep.subr.bf16.mxu0 0
        %1306 = vmatpush1.bf16.msra.mxu0 0
        %1307 = vmatprep.subr.bf16.mxu0 0
        %1308 = vmatpush1.bf16.msra.mxu0 0
        %1309 = vmatprep.subr.bf16.mxu0 0
        %1310 = vmatpush1.bf16.msra.mxu0 0
        %1311 = vmatprep.subr.bf16.mxu0 0
        %1312 = vmatpush1.bf16.msra.mxu0 0
        %1313 = vmatprep.subr.bf16.mxu0 0
        %1314 = vmatpush1.bf16.msra.mxu0 0
        %1315 = vmatprep.subr.bf16.mxu0 0
        %1316 = vmatpush1.bf16.msra.mxu0 0
        %1317 = vmatprep.subr.bf16.mxu0 0
        %1318 = vmatpush1.bf16.msra.mxu0 0
        %1319 = vmatprep.subr.bf16.mxu0 0
        %1320 = vmatpush1.bf16.msra.mxu0 %v1303
        %1321 = vmatprep.subr.bf16.mxu0 0
        %1322 = vmatpush2.bf16.msra.mxu0 0
        %1323 = vmatprep.subr.bf16.mxu0 0
        %1324 = vmatpush2.bf16.msra.mxu0 0
        %1325 = vmatprep.subr.bf16.mxu0 0
        %1326 = vmatpush2.bf16.msra.mxu0 0
        %1327 = vmatprep.subr.bf16.mxu0 0
        %1328 = vmatpush2.bf16.msra.mxu0 0
        %1329 = vmatprep.subr.bf16.mxu0 0
        %1330 = vmatpush2.bf16.msra.mxu0 0
        %1331 = vmatprep.subr.bf16.mxu0 0
        %1332 = vmatpush2.bf16.msra.mxu0 0
        %1333 = vmatprep.subr.bf16.mxu0 0
        %1334 = vmatpush2.bf16.msra.mxu0 0
        %1335 = vmatprep.subr.bf16.mxu0 0
        %1336 = vmatpush2.bf16.msra.mxu0 0
        %1337 = vmatprep.mubr.bf16.mxu0 0
        %1338 = vmatmul.mubr.bf16.gmra.mxu0 %v1300
        %v1339 = vpop.f32.mrf.mxu0
        %v1340 = vadd.f32 0.0, %v1339
        %v1341 = vpop.f32.mrf.mxu0
        %v1342 = vpop.f32.mrf.mxu0
        %v1343 = vpop.f32.mrf.mxu0
        %1344 = vdwg.mxu0
        %1345 = vrot.lane.b32.xlu0 %v943, 48
        %v1346 = vpop.permute.xlu0 %1345
        %v1348 = vsel %vm1051, %v1296, 0
        %v1351 = vsel %vm1081, %v1346, 0
        %1353 = vmatprep.subr.bf16.mxu0 0
        %1354 = vmatpush1.bf16.msra.mxu0 0
        %1355 = vmatprep.subr.bf16.mxu0 0
        %1356 = vmatpush1.bf16.msra.mxu0 0
        %1357 = vmatprep.subr.bf16.mxu0 0
        %1358 = vmatpush1.bf16.msra.mxu0 0
        %1359 = vmatprep.subr.bf16.mxu0 0
        %1360 = vmatpush1.bf16.msra.mxu0 0
        %1361 = vmatprep.subr.bf16.mxu0 0
        %1362 = vmatpush1.bf16.msra.mxu0 0
        %1363 = vmatprep.subr.bf16.mxu0 0
        %1364 = vmatpush1.bf16.msra.mxu0 0
        %1365 = vmatprep.subr.bf16.mxu0 0
        %1366 = vmatpush1.bf16.msra.mxu0 0
        %1367 = vmatprep.subr.bf16.mxu0 0
        %1368 = vmatpush1.bf16.msra.mxu0 %v1351
        %1369 = vmatprep.subr.bf16.mxu0 0
        %1370 = vmatpush2.bf16.msra.mxu0 0
        %1371 = vmatprep.subr.bf16.mxu0 0
        %1372 = vmatpush2.bf16.msra.mxu0 0
        %1373 = vmatprep.subr.bf16.mxu0 0
        %1374 = vmatpush2.bf16.msra.mxu0 0
        %1375 = vmatprep.subr.bf16.mxu0 0
        %1376 = vmatpush2.bf16.msra.mxu0 0
        %1377 = vmatprep.subr.bf16.mxu0 0
        %1378 = vmatpush2.bf16.msra.mxu0 0
        %1379 = vmatprep.subr.bf16.mxu0 0
        %1380 = vmatpush2.bf16.msra.mxu0 0
        %1381 = vmatprep.subr.bf16.mxu0 0
        %1382 = vmatpush2.bf16.msra.mxu0 0
        %1383 = vmatprep.subr.bf16.mxu0 0
        %1384 = vmatpush2.bf16.msra.mxu0 0
        %1385 = vmatprep.mubr.bf16.mxu0 0
        %1386 = vmatmul.mubr.bf16.gmra.mxu0 %v1348
        %v1387 = vpop.f32.mrf.mxu0
        %v1388 = vadd.f32 0.0, %v1387
        %v1389 = vpop.f32.mrf.mxu0
        %v1390 = vpop.f32.mrf.mxu0
        %v1391 = vpop.f32.mrf.mxu0
        %1392 = vdwg.mxu0
        %1395 = vrot.lane.b32.xlu0 %v1340, 16
        %v1396 = vpop.permute.xlu0 %1395
        %1397 = vrot.lane.b32.xlu0 %v1388, 16
        %v1398 = vpop.permute.xlu0 %1397
        %v1401 = vsel %vm956, %v1120, %v1396
        %v1402 = vsel %vm956, %v1168, %v1398
        %v1403 = vpack.c.bf16 %v1402, %v1401
        %v1404 = vld [vmem:[%s756] sm:$0xf]
        %v1405 = vld [vmem:[%s756 + $0x4] sm:$0xf]
        %v1406 = vld [vmem:[%s756 + $0x8] sm:$0xf]
        %v1407 = vld [vmem:[%s756 + $0xc] sm:$0xf]
        %v1408 = vld [vmem:[%s759] sm:$0x1]
        %v1410 = vlaneseq
        %v1411 = vshrl.u32 %v1410, 7
        %v1412 = vsub.s32 0, %v1411
        %v1413 = vrot.slane %v1408, %v1412
        %v1419 = vunpack.c.l.b16 %v1404
        %v1420 = vunpack.c.l.b16 %v1405
        %v1421 = vunpack.c.l.b16 %v1406
        %v1422 = vunpack.c.l.b16 %v1407
        %v1423 = vpack.c.b16 %v1420, %v1419
        %v1424 = vpack.c.b16 %v1422, %v1421
        %v1428 = vsel %vm869, %v1403, 0
        %1430 = vmatprep.subr.bf16.mxu0 0
        %1431 = vmatpush1.bf16.msra.mxu0 0
        %1432 = vmatprep.subr.bf16.mxu0 0
        %1433 = vmatpush1.bf16.msra.mxu0 0
        %1434 = vmatprep.subr.bf16.mxu0 0
        %1435 = vmatpush1.bf16.msra.mxu0 0
        %1436 = vmatprep.subr.bf16.mxu0 0
        %1437 = vmatpush1.bf16.msra.mxu0 0
        %1438 = vmatprep.subr.bf16.mxu0 0
        %1439 = vmatpush1.bf16.msra.mxu0 0
        %1440 = vmatprep.subr.bf16.mxu0 0
        %1441 = vmatpush1.bf16.msra.mxu0 0
        %1442 = vmatprep.subr.bf16.mxu0 0
        %1443 = vmatpush1.bf16.msra.mxu0 %v1424
        %1444 = vmatprep.subr.bf16.mxu0 0
        %1445 = vmatpush1.bf16.msra.mxu0 %v1423
        %1446 = vmatprep.subr.bf16.mxu0 0
        %1447 = vmatpush2.bf16.msra.mxu0 0
        %1448 = vmatprep.subr.bf16.mxu0 0
        %1449 = vmatpush2.bf16.msra.mxu0 0
        %1450 = vmatprep.subr.bf16.mxu0 0
        %1451 = vmatpush2.bf16.msra.mxu0 0
        %1452 = vmatprep.subr.bf16.mxu0 0
        %1453 = vmatpush2.bf16.msra.mxu0 0
        %1454 = vmatprep.subr.bf16.mxu0 0
        %1455 = vmatpush2.bf16.msra.mxu0 0
        %1456 = vmatprep.subr.bf16.mxu0 0
        %1457 = vmatpush2.bf16.msra.mxu0 0
        %1458 = vmatprep.subr.bf16.mxu0 0
        %1459 = vmatpush2.bf16.msra.mxu0 0
        %1460 = vmatprep.subr.bf16.mxu0 0
        %1461 = vmatpush2.bf16.msra.mxu0 0
        %1462 = vmatprep.mubr.bf16.mxu0 0
        %1463 = vmatmul.mubr.bf16.gmra.mxu0 %v1428
        %v1464 = vpop.f32.mrf.mxu0
        %v1465 = vadd.f32 %v1413, %v1464
        %v1466 = vpop.f32.mrf.mxu0
        %v1467 = vpop.f32.mrf.mxu0
        %v1468 = vadd.f32 %v1413, %v1467
        %v1469 = vpop.f32.mrf.mxu0
        %1470 = vdwg.mxu0
        %v1471 = vadd.f32 %v1465, %v843
        %v1472 = vadd.f32 %v1468, %v844
        %v1473 = vld [vmem:[%s762] sm:$0x1]
        %v1474 = vld [vmem:[%s765] sm:$0x1]
        %v1475 = vsel %vm869, %v1471, 0.0
        %1476 = vadd.xlane.f32.xlu0 %v1475
        %v1477 = vpop.xlane.xlu0 %1476
        %v1478 = vsel %vm869, %v1472, 0.0
        %1479 = vadd.xlane.f32.xlu0 %v1478
        %v1480 = vpop.xlane.xlu0 %1479
        %v1481 = vrcp.pop 32.0
        %v1482 = vmul.f32 %v1477, %v1481
        %v1483 = vmul.f32 %v1480, %v1481
        %v1484 = vsub.f32 %v1471, %v1482
        %v1485 = vsub.f32 %v1472, %v1483
        %v1486 = vmul.f32 %v1484, %v1484
        %v1487 = vmul.f32 %v1485, %v1485
        %v1488 = vsel %vm869, %v1486, 0.0
        %1489 = vadd.xlane.f32.xlu0 %v1488
        %v1490 = vpop.xlane.xlu0 %1489
        %v1491 = vsel %vm869, %v1487, 0.0
        %1492 = vadd.xlane.f32.xlu0 %v1491
        %v1493 = vpop.xlane.xlu0 %1492
        %v1494 = vmul.f32 %v1490, %v1481
        %v1495 = vmul.f32 %v1493, %v1481
        %v1496 = vadd.f32 %v1494, 1e-12
        %v1497 = vadd.f32 %v1495, 1e-12
        %v1498 = vrsqrt.pop %v1496
        %v1499 = vrsqrt.pop %v1497
        %v1500 = vmul.f32 %v1484, %v1498
        %v1501 = vmul.f32 %v1485, %v1499
        %v1503 = vlaneseq
        %v1504 = vshrl.u32 %v1503, 7
        %v1505 = vsub.s32 0, %v1504
        %v1506 = vrot.slane %v1473, %v1505
        %v1508 = vmul.f32 %v1500, %v1506
        %v1509 = vmul.f32 %v1501, %v1506
        %v1511 = vlaneseq
        %v1512 = vshrl.u32 %v1511, 7
        %v1513 = vsub.s32 0, %v1512
        %v1514 = vrot.slane %v1474, %v1513
        %v1516 = vadd.f32 %v1508, %v1514
        %v1517 = vadd.f32 %v1509, %v1514
        %v1518 = vpack.c.bf16 %v1517, %v1516
        %v1519 = vld [vmem:[%s770] sm:$0xf]
        %v1520 = vld [vmem:[%s770 + $0x4] sm:$0xf]
        %v1521 = vld [vmem:[%s770 + $0x8] sm:$0xf]
        %v1522 = vld [vmem:[%s770 + $0xc] sm:$0xf]
        %v1523 = vld [vmem:[%s773] sm:$0x1]
        %v1525 = vlaneseq
        %v1526 = vshrl.u32 %v1525, 7
        %v1527 = vsub.s32 0, %v1526
        %v1528 = vrot.slane %v1523, %v1527
        %v1534 = vunpack.c.l.b16 %v1519
        %v1535 = vunpack.c.l.b16 %v1520
        %v1536 = vunpack.c.l.b16 %v1521
        %v1537 = vunpack.c.l.b16 %v1522
        %v1538 = vpack.c.b16 %v1535, %v1534
        %v1539 = vpack.c.b16 %v1537, %v1536
        %v1543 = vsel %vm869, %v1518, 0
        %1545 = vmatprep.subr.bf16.mxu0 0
        %1546 = vmatpush1.bf16.msra.mxu0 0
        %1547 = vmatprep.subr.bf16.mxu0 0
        %1548 = vmatpush1.bf16.msra.mxu0 0
        %1549 = vmatprep.subr.bf16.mxu0 0
        %1550 = vmatpush1.bf16.msra.mxu0 0
        %1551 = vmatprep.subr.bf16.mxu0 0
        %1552 = vmatpush1.bf16.msra.mxu0 0
        %1553 = vmatprep.subr.bf16.mxu0 0
        %1554 = vmatpush1.bf16.msra.mxu0 0
        %1555 = vmatprep.subr.bf16.mxu0 0
        %1556 = vmatpush1.bf16.msra.mxu0 0
        %1557 = vmatprep.subr.bf16.mxu0 0
        %1558 = vmatpush1.bf16.msra.mxu0 %v1539
        %1559 = vmatprep.subr.bf16.mxu0 0
        %1560 = vmatpush1.bf16.msra.mxu0 %v1538
        %1561 = vmatprep.subr.bf16.mxu0 0
        %1562 = vmatpush2.bf16.msra.mxu0 0
        %1563 = vmatprep.subr.bf16.mxu0 0
        %1564 = vmatpush2.bf16.msra.mxu0 0
        %1565 = vmatprep.subr.bf16.mxu0 0
        %1566 = vmatpush2.bf16.msra.mxu0 0
        %1567 = vmatprep.subr.bf16.mxu0 0
        %1568 = vmatpush2.bf16.msra.mxu0 0
        %1569 = vmatprep.subr.bf16.mxu0 0
        %1570 = vmatpush2.bf16.msra.mxu0 0
        %1571 = vmatprep.subr.bf16.mxu0 0
        %1572 = vmatpush2.bf16.msra.mxu0 0
        %1573 = vmatprep.subr.bf16.mxu0 0
        %1574 = vmatpush2.bf16.msra.mxu0 0
        %1575 = vmatprep.subr.bf16.mxu0 0
        %1576 = vmatpush2.bf16.msra.mxu0 0
        %1577 = vmatprep.mubr.bf16.mxu0 0
        %1578 = vmatmul.mubr.bf16.gmra.mxu0 %v1543
        %v1579 = vpop.f32.mrf.mxu0
        %v1580 = vadd.f32 %v1528, %v1579
        %v1581 = vpop.f32.mrf.mxu0
        %v1582 = vpop.f32.mrf.mxu0
        %v1583 = vadd.f32 %v1528, %v1582
        %v1584 = vpop.f32.mrf.mxu0
        %1585 = vdwg.mxu0
        %v1586 = vmul.f32 %v1580, 0.5
        %v1587 = vmul.f32 %v1583, 0.5
        %v1588 = vmul.f32 %v1580, 0.044715
        %v1589 = vmul.f32 %v1583, 0.044715
        %v1590 = vmul.f32 %v1588, %v1580
        %v1591 = vmul.f32 %v1589, %v1583
        %v1592 = vmul.f32 %v1590, %v1580
        %v1593 = vmul.f32 %v1591, %v1583
        %v1594 = vadd.f32 %v1580, %v1592
        %v1595 = vadd.f32 %v1583, %v1593
        %v1596 = vmul.f32 %v1594, 0.7978846
        %v1597 = vmul.f32 %v1595, 0.7978846
        %v1598 = vtanh.pop %v1596
        %v1599 = vtanh.pop %v1597
        %v1600 = vadd.f32 %v1598, 1.0
        %v1601 = vadd.f32 %v1599, 1.0
        %v1602 = vmul.f32 %v1586, %v1600
        %v1603 = vmul.f32 %v1587, %v1601
        %v1604 = vpack.c.bf16 %v1603, %v1602
        %v1605 = vld [vmem:[%s778] sm:$0xf]
        %v1606 = vld [vmem:[%s778 + $0x4] sm:$0xf]
        %v1607 = vld [vmem:[%s778 + $0x8] sm:$0xf]
        %v1608 = vld [vmem:[%s778 + $0xc] sm:$0xf]
        %v1609 = vld [vmem:[%s778 + $0x10] sm:$0xf]
        %v1610 = vld [vmem:[%s778 + $0x14] sm:$0xf]
        %v1611 = vld [vmem:[%s778 + $0x18] sm:$0xf]
        %v1612 = vld [vmem:[%s778 + $0x1c] sm:$0xf]
        %v1613 = vld [vmem:[%s781] sm:$0x1]
        %v1615 = vlaneseq
        %v1616 = vshrl.u32 %v1615, 7
        %v1617 = vsub.s32 0, %v1616
        %v1618 = vrot.slane %v1613, %v1617
        %v1628 = vunpack.c.l.b16 %v1605
        %v1629 = vunpack.c.l.b16 %v1606
        %v1630 = vunpack.c.l.b16 %v1607
        %v1631 = vunpack.c.l.b16 %v1608
        %v1632 = vunpack.c.l.b16 %v1609
        %v1633 = vunpack.c.l.b16 %v1610
        %v1634 = vunpack.c.l.b16 %v1611
        %v1635 = vunpack.c.l.b16 %v1612
        %v1636 = vpack.c.b16 %v1629, %v1628
        %v1637 = vpack.c.b16 %v1631, %v1630
        %v1638 = vpack.c.b16 %v1633, %v1632
        %v1639 = vpack.c.b16 %v1635, %v1634
        %vm1644 = vcmask 523264
        %v1646 = vsel %vm1644, %v1604, 0
        %1648 = vmatprep.subr.bf16.mxu0 0
        %1649 = vmatpush1.bf16.msra.mxu0 0
        %1650 = vmatprep.subr.bf16.mxu0 0
        %1651 = vmatpush1.bf16.msra.mxu0 0
        %1652 = vmatprep.subr.bf16.mxu0 0
        %1653 = vmatpush1.bf16.msra.mxu0 0
        %1654 = vmatprep.subr.bf16.mxu0 0
        %1655 = vmatpush1.bf16.msra.mxu0 0
        %1656 = vmatprep.subr.bf16.mxu0 0
        %1657 = vmatpush1.bf16.msra.mxu0 %v1639
        %1658 = vmatprep.subr.bf16.mxu0 0
        %1659 = vmatpush1.bf16.msra.mxu0 %v1638
        %1660 = vmatprep.subr.bf16.mxu0 0
        %1661 = vmatpush1.bf16.msra.mxu0 %v1637
        %1662 = vmatprep.subr.bf16.mxu0 0
        %1663 = vmatpush1.bf16.msra.mxu0 %v1636
        %1664 = vmatprep.subr.bf16.mxu0 0
        %1665 = vmatpush2.bf16.msra.mxu0 0
        %1666 = vmatprep.subr.bf16.mxu0 0
        %1667 = vmatpush2.bf16.msra.mxu0 0
        %1668 = vmatprep.subr.bf16.mxu0 0
        %1669 = vmatpush2.bf16.msra.mxu0 0
        %1670 = vmatprep.subr.bf16.mxu0 0
        %1671 = vmatpush2.bf16.msra.mxu0 0
        %1672 = vmatprep.subr.bf16.mxu0 0
        %1673 = vmatpush2.bf16.msra.mxu0 0
        %1674 = vmatprep.subr.bf16.mxu0 0
        %1675 = vmatpush2.bf16.msra.mxu0 0
        %1676 = vmatprep.subr.bf16.mxu0 0
        %1677 = vmatpush2.bf16.msra.mxu0 0
        %1678 = vmatprep.subr.bf16.mxu0 0
        %1679 = vmatpush2.bf16.msra.mxu0 0
        %1680 = vmatprep.mubr.bf16.mxu0 0
        %1681 = vmatmul.mubr.bf16.gmra.mxu0 %v1646
        %v1682 = vpop.f32.mrf.mxu0
        %v1683 = vadd.f32 %v1618, %v1682
        %v1684 = vpop.f32.mrf.mxu0
        %v1685 = vpop.f32.mrf.mxu0
        %v1686 = vadd.f32 %v1618, %v1685
        %v1687 = vpop.f32.mrf.mxu0
        %1688 = vdwg.mxu0
        %v1689 = vadd.f32 %v1683, %v1516
        %v1690 = vadd.f32 %v1686, %v1517
        %v1691 = vld [vmem:[%s784] sm:$0x1]
        %v1692 = vld [vmem:[%s787] sm:$0x1]
        %v1693 = vsel %vm869, %v1689, 0.0
        %1694 = vadd.xlane.f32.xlu0 %v1693
        %v1695 = vpop.xlane.xlu0 %1694
        %v1696 = vsel %vm869, %v1690, 0.0
        %1697 = vadd.xlane.f32.xlu0 %v1696
        %v1698 = vpop.xlane.xlu0 %1697
        %v1699 = vmul.f32 %v1695, %v1481
        %v1700 = vmul.f32 %v1698, %v1481
        %v1701 = vsub.f32 %v1689, %v1699
        %v1702 = vsub.f32 %v1690, %v1700
        %v1703 = vmul.f32 %v1701, %v1701
        %v1704 = vmul.f32 %v1702, %v1702
        %v1705 = vsel %vm869, %v1703, 0.0
        %1706 = vadd.xlane.f32.xlu0 %v1705
        %v1707 = vpop.xlane.xlu0 %1706
        %v1708 = vsel %vm869, %v1704, 0.0
        %1709 = vadd.xlane.f32.xlu0 %v1708
        %v1710 = vpop.xlane.xlu0 %1709
        %v1711 = vmul.f32 %v1707, %v1481
        %v1712 = vmul.f32 %v1710, %v1481
        %v1713 = vadd.f32 %v1711, 1e-12
        %v1714 = vadd.f32 %v1712, 1e-12
        %v1715 = vrsqrt.pop %v1713
        %v1716 = vrsqrt.pop %v1714
        %v1717 = vmul.f32 %v1701, %v1715
        %v1718 = vmul.f32 %v1702, %v1716
        %v1720 = vlaneseq
        %v1721 = vshrl.u32 %v1720, 7
        %v1722 = vsub.s32 0, %v1721
        %v1723 = vrot.slane %v1691, %v1722
        %v1725 = vmul.f32 %v1717, %v1723
        %v1726 = vmul.f32 %v1718, %v1723
        %v1728 = vlaneseq
        %v1729 = vshrl.u32 %v1728, 7
        %v1730 = vsub.s32 0, %v1729
        %v1731 = vrot.slane %v1692, %v1730
        %v1733 = vadd.f32 %v1725, %v1731
        %v1734 = vadd.f32 %v1726, %v1731
        %1735 = vst.msk [vmem:[#allocation2] sm:$0xff] %vm869, %v1733
        %1736 = vst.msk [vmem:[#allocation2 + $0x8] sm:$0xff] %vm869, %v1734
        %p1737 = scmp.eq.s32.totalorder %s32, 1
        // Predicated region
        $region105: #{bert_multilabel_forward.1} parent=99 // pred_check
          %p1738 = pneg %p1737
        $region106: #{bert_multilabel_forward.1} parent=99 // pred_check_branch
          %1740 = sbr.rel (%p1738) target = $region108
        $region107: #{bert_multilabel_forward.1} parent=99 // pred_region
          %v1741 = vld [vmem:[#allocation2] ss:$8 sm:$0x3]
          %v1742 = vpack.c.bf16 %v1741, %v1741
          %v1743 = vld [vmem:[%s16] sm:$0xf]
          %v1744 = vld [vmem:[%s16 + $0x4] sm:$0xf]
          %v1745 = vld [vmem:[%s16 + $0x8] sm:$0xf]
          %v1746 = vld [vmem:[%s16 + $0xc] sm:$0xf]
          %v1747 = vld [vmem:[%s17] sm:$0x1]
          %v1749 = vlaneseq
          %v1750 = vshrl.u32 %v1749, 7
          %v1751 = vsub.s32 0, %v1750
          %v1752 = vrot.slane %v1747, %v1751
          %v1758 = vunpack.c.l.b16 %v1743
          %v1759 = vunpack.c.l.b16 %v1744
          %v1760 = vunpack.c.l.b16 %v1745
          %v1761 = vunpack.c.l.b16 %v1746
          %v1762 = vpack.c.b16 %v1759, %v1758
          %v1763 = vpack.c.b16 %v1761, %v1760
          %v1767 = vsel %vm869, %v1742, 0
          %1769 = vmatprep.subr.bf16.mxu0 0
          %1770 = vmatpush1.bf16.msra.mxu0 0
          %1771 = vmatprep.subr.bf16.mxu0 0
          %1772 = vmatpush1.bf16.msra.mxu0 0
          %1773 = vmatprep.subr.bf16.mxu0 0
          %1774 = vmatpush1.bf16.msra.mxu0 0
          %1775 = vmatprep.subr.bf16.mxu0 0
          %1776 = vmatpush1.bf16.msra.mxu0 0
          %1777 = vmatprep.subr.bf16.mxu0 0
          %1778 = vmatpush1.bf16.msra.mxu0 0
          %1779 = vmatprep.subr.bf16.mxu0 0
          %1780 = vmatpush1.bf16.msra.mxu0 0
          %1781 = vmatprep.subr.bf16.mxu0 0
          %1782 = vmatpush1.bf16.msra.mxu0 %v1763
          %1783 = vmatprep.subr.bf16.mxu0 0
          %1784 = vmatpush1.bf16.msra.mxu0 %v1762
          %1785 = vmatprep.subr.bf16.mxu0 0
          %1786 = vmatpush2.bf16.msra.mxu0 0
          %1787 = vmatprep.subr.bf16.mxu0 0
          %1788 = vmatpush2.bf16.msra.mxu0 0
          %1789 = vmatprep.subr.bf16.mxu0 0
          %1790 = vmatpush2.bf16.msra.mxu0 0
          %1791 = vmatprep.subr.bf16.mxu0 0
          %1792 = vmatpush2.bf16.msra.mxu0 0
          %1793 = vmatprep.subr.bf16.mxu0 0
          %1794 = vmatpush2.bf16.msra.mxu0 0
          %1795 = vmatprep.subr.bf16.mxu0 0
          %1796 = vmatpush2.bf16.msra.mxu0 0
          %1797 = vmatprep.subr.bf16.mxu0 0
          %1798 = vmatpush2.bf16.msra.mxu0 0
          %1799 = vmatprep.subr.bf16.mxu0 0
          %1800 = vmatpush2.bf16.msra.mxu0 0
          %1801 = vmatprep.mubr.bf16.mxu0 0
          %1802 = vmatmul.mubr.bf16.gmra.mxu0 %v1767
          %v1803 = vpop.f32.mrf.mxu0
          %v1804 = vadd.f32 %v1752, %v1803
          %v1805 = vpop.f32.mrf.mxu0
          %v1806 = vpop.f32.mrf.mxu0
          %v1807 = vpop.f32.mrf.mxu0
          %1808 = vdwg.mxu0
          %v1809 = vtanh.pop %v1804
          %v1810 = vpack.c.bf16 %v1809, %v1809
          %v1811 = vld [vmem:[%s18] sm:$0xf]
          %v1812 = vld [vmem:[%s18 + $0x4] sm:$0xf]
          %v1813 = vld [vmem:[%s18 + $0x8] sm:$0xf]
          %v1814 = vld [vmem:[%s18 + $0xc] sm:$0xf]
          %v1815 = vld [vmem:[%s19] sm:$0x1]
          %v1817 = vlaneseq
          %v1818 = vshrl.u32 %v1817, 7
          %v1819 = vsub.s32 0, %v1818
          %v1820 = vrot.slane %v1815, %v1819
          %v1826 = vunpack.c.l.b16 %v1811
          %v1827 = vunpack.c.l.b16 %v1812
          %v1828 = vunpack.c.l.b16 %v1813
          %v1829 = vunpack.c.l.b16 %v1814
          %v1830 = vpack.c.b16 %v1827, %v1826
          %v1831 = vpack.c.b16 %v1829, %v1828
          %v1835 = vsel %vm869, %v1810, 0
          %1837 = vmatprep.subr.bf16.mxu0 0
          %1838 = vmatpush1.bf16.msra.mxu0 0
          %1839 = vmatprep.subr.bf16.mxu0 0
          %1840 = vmatpush1.bf16.msra.mxu0 0
          %1841 = vmatprep.subr.bf16.mxu0 0
          %1842 = vmatpush1.bf16.msra.mxu0 0
          %1843 = vmatprep.subr.bf16.mxu0 0
          %1844 = vmatpush1.bf16.msra.mxu0 0
          %1845 = vmatprep.subr.bf16.mxu0 0
          %1846 = vmatpush1.bf16.msra.mxu0 0
          %1847 = vmatprep.subr.bf16.mxu0 0
          %1848 = vmatpush1.bf16.msra.mxu0 0
          %1849 = vmatprep.subr.bf16.mxu0 0
          %1850 = vmatpush1.bf16.msra.mxu0 %v1831
          %1851 = vmatprep.subr.bf16.mxu0 0
          %1852 = vmatpush1.bf16.msra.mxu0 %v1830
          %1853 = vmatprep.subr.bf16.mxu0 0
          %1854 = vmatpush2.bf16.msra.mxu0 0
          %1855 = vmatprep.subr.bf16.mxu0 0
          %1856 = vmatpush2.bf16.msra.mxu0 0
          %1857 = vmatprep.subr.bf16.mxu0 0
          %1858 = vmatpush2.bf16.msra.mxu0 0
          %1859 = vmatprep.subr.bf16.mxu0 0
          %1860 = vmatpush2.bf16.msra.mxu0 0
          %1861 = vmatprep.subr.bf16.mxu0 0
          %1862 = vmatpush2.bf16.msra.mxu0 0
          %1863 = vmatprep.subr.bf16.mxu0 0
          %1864 = vmatpush2.bf16.msra.mxu0 0
          %1865 = vmatprep.subr.bf16.mxu0 0
          %1866 = vmatpush2.bf16.msra.mxu0 0
          %1867 = vmatprep.subr.bf16.mxu0 0
          %1868 = vmatpush2.bf16.msra.mxu0 0
          %1869 = vmatprep.mubr.bf16.mxu0 0
          %1870 = vmatmul.mubr.bf16.gmra.mxu0 %v1835
          %v1871 = vpop.f32.mrf.mxu0
          %v1872 = vadd.f32 %v1820, %v1871
          %v1873 = vpop.f32.mrf.mxu0
          %v1874 = vpop.f32.mrf.mxu0
          %v1875 = vpop.f32.mrf.mxu0
          %1876 = vdwg.mxu0
          %1877 = vst [vmem:[#allocation3] sm:$0x3] %v1872
        $region108: #{bert_multilabel_forward.1} parent=99 // pred_fallthru
          _
        // Predicated region
        $region109: #{bert_multilabel_forward.1} parent=99 // pred_check
          %p1878 = pneg %p525
        $region110: #{bert_multilabel_forward.1} parent=99 // pred_check_branch
          %1880 = sbr.rel (%p1878) target = $region112
        $region111: #{bert_multilabel_forward.1} parent=99 // pred_region
          %s1882 = ssub.s32 32, 32
          %1883 = vsyncadd [#allocation4], %s1882
          %s1885 = sshll.u32 [#allocation3], 4
          %s1886 = int_to_ptr.vmem [resolvable:$true] %s1885
          %1888 = dma.vmem_to_hbm [thread:$0]  %s1886, 32, %s20, [#allocation4]
        $region112: #{bert_multilabel_forward.1} parent=99 // pred_fallthru
          _
        // Predicated region
        $region113: #{bert_multilabel_forward.1} parent=99 // pred_check
          %p1889 = pneg %p525
        $region114: #{bert_multilabel_forward.1} parent=99 // pred_check_branch
          %1891 = sbr.rel (%p1889) target = $region116
        $region115: #{bert_multilabel_forward.1} parent=99 // pred_region
          %1892 = dma.done [#allocation4], 32
        $region116: #{bert_multilabel_forward.1} parent=99 // pred_fallthru
          _
      $region100: #{bert_multilabel_forward.1} parent=5 // pred_fallthru
        _
      %p1893 = scmp.le.s32.totalorder 2, %s27
      // Predicated region
      $region117: #{bert_multilabel_forward.1} parent=5 // pred_check
        %p1894 = pneg %p1893
      $region118: #{bert_multilabel_forward.1} parent=5 // pred_check_branch
        %1896 = sbr.rel (%p1894) target = $region120
      $region119: #{bert_multilabel_forward.1} parent=5 // pred_region
        %s1897 = ssub.s32 %s27, 2
      $region120: #{bert_multilabel_forward.1} parent=5 // pred_fallthru
        _
    $region6: #{bert_multilabel_forward.1} parent=1 // loop_footer
      %s31 = sadd.s32 1, %s27
    $region7: #{bert_multilabel_forward.1} parent=1 // loop_footer_branch
      %26 = sbr.rel target = $region3
    $region8: #{bert_multilabel_forward.1} parent=1 // loop_exit
      _
    %1898 = vsyncpa [#allocation4], 1
    %s1899 = scalar_lea.sflag [#allocation4], 1
    %1900 = vsyncpa %s1899, 1

</llo_original>
